<compile_context>
chip_gen: v5e
topology: v5e:2x2
jax: 0.10.0
libtpu: 0.0.40
codegen_flags: <defaults>
</compile_context>

<pallas_src>
import functools

import numpy as np

import jax
import jax.numpy as jnp
from jax import lax
from jax.experimental import pallas as pl
from jax.experimental.pallas import tpu as pltpu

BATCH = 2
SEQ_LEN = 16      # config.params['genmap_colNum']  -> H
INPUT_SIZE = 16   # config.params['genmap_rowNum']  -> W
LRELU_SLOPE = 0.2
LN_EPS = 1e-6


# ---------------------------------------------------------------------------
# The single fused Pallas kernel
# ---------------------------------------------------------------------------
def _disc_fused_kernel(x_ref, s1_ref, r1_ref, s2_hbm_ref, r2_hbm_ref,
                       o_ref, s2_ref, r2_ref, dma_sem,
                       *, lay1, lay2, layr2, eps, slope, h1, h2, h4,
                       c1w, c2w2, w4):
    # Stage-2/3 constants live in HBM (pl.ANY); start their DMA immediately so the
    # copy overlaps all of stage-1 compute (with grid=(1,) the auto-pipeline cannot).
    cp_s2 = pltpu.make_async_copy(s2_hbm_ref, s2_ref, dma_sem.at[0])
    cp_r2 = pltpu.make_async_copy(r2_hbm_ref, r2_ref, dma_sem.at[1])
    cp_s2.start()
    cp_r2.start()

    dot = functools.partial(jnp.dot, preferred_element_type=jnp.float32)

    def view(ref, lay, name):
        # Zero-cost static window into a packed constant slab.
        off, (r, c) = lay[name]
        return ref[off:off + r, 0:c]

    def lane_layernorm(t, w, b):
        # LayerNorm over the full lane axis (stage 1: lanes == W).
        mu = jnp.mean(t, axis=-1, keepdims=True)
        tc = t - mu
        var = jnp.mean(tc * tc, axis=-1, keepdims=True)
        return tc * lax.rsqrt(var + eps) * w + b

    def group_layernorm(t, a, w, b):
        # LayerNorm over contiguous lane groups (the W sub-axis of a (C, W) lane
        # layout); `a` is a block-diagonal group-averaging matrix (MXU, no reshapes).
        mu = dot(t, a)
        tc = t - mu
        var = dot(tc * tc, a)
        return tc * lax.rsqrt(var + eps) * w + b

    def conv_lrelu(t, r_stacked, bias, k, pad, h, cout_w):
        # Conv2d(stride 1, zero pad) + bias + LeakyReLU on the (rows, lanes) slab:
        #   U   = t @ [R_0 | ... | R_{k-1}]        (ONE MXU matmul for all taps)
        #   out = sum_ky mask_ky * roll(U_ky, pad-ky, axis=0)   (XLU sublane shifts)
        rows = t.shape[0]
        u = dot(t, r_stacked)                                   # (rows, k*cout_w)
        iota = lax.broadcasted_iota(jnp.int32, (rows, 1), 0)
        riy = iota & (h - 1) if (h & (h - 1)) == 0 else iota % h  # y within batch
        parts = []
        for ky in range(k):                                     # static unroll
            s = ky - pad
            u_k = u[:, ky * cout_w:(ky + 1) * cout_w]
            if s != 0:
                u_k = pltpu.roll(u_k, shift=(-s) % rows, axis=0)
                keep = jnp.logical_and(riy >= -s, riy < h - s)  # y zero-pad + batch edge
                u_k = jnp.where(keep, u_k, 0.0)
            parts.append(u_k)
        while len(parts) > 1:                                   # tree reduction
            nxt = [parts[i] + parts[i + 1] for i in range(0, len(parts) - 1, 2)]
            if len(parts) % 2:
                nxt.append(parts[-1])
            parts = nxt
        acc = parts[0] + bias
        return jnp.where(acc > 0, acc, slope * acc)

    x = x_ref[...].astype(jnp.float32)                          # (B*H, W) = (32, 16)

    # stage 1: norm1 -> conv(1->8,k7,p3) -> LeakyReLU -> Dropout(id) -> AvgPool2
    n1 = lane_layernorm(x, view(s1_ref, lay1, 'ln1_w'), view(s1_ref, lay1, 'ln1_b'))
    act1 = conv_lrelu(n1, r1_ref[...], view(s1_ref, lay1, 'b1'),
                      k=7, pad=3, h=h1, cout_w=c1w)             # (32, 128)
    l1 = view(s1_ref, lay1, 'l1')
    pool1 = dot(dot(l1, act1), view(s1_ref, lay1, 'p1'))        # (16, 64)
    skip = dot(dot(l1, x), view(s1_ref, lay1, 'q1'))            # avgpool(x), bcast over C
    in2 = pool1 + skip                                          # input_2

    # stage-2/3 constants must be resident in VMEM from here on.
    cp_s2.wait()
    cp_r2.wait()

    # stage 2: norm2 -> conv(8->32,k3,p1) -> LeakyReLU -> Dropout(id) -> AvgPool2
    n2 = group_layernorm(in2, view(s2_ref, lay2, 'a2'),
                         view(s2_ref, lay2, 'ln2_w'), view(s2_ref, lay2, 'ln2_b'))
    act2 = conv_lrelu(n2, view(r2_ref, layr2, 'r2s'), view(r2_ref, layr2, 'b2'),
                      k=3, pad=1, h=h2, cout_w=c2w2)            # (16, 256)
    in3 = dot(dot(view(s2_ref, lay2, 'l2'), act2), view(s2_ref, lay2, 'p2'))  # (8, 128)

    # stage 3: norm3 -> conv(32->1,k3,p1) -> LeakyReLU -> global AvgPool -> sigmoid
    n3 = group_layernorm(in3, view(s2_ref, lay2, 'a3'),
                         view(s2_ref, lay2, 'ln3_w'), view(s2_ref, lay2, 'ln3_b'))
    act3 = conv_lrelu(n3, view(s2_ref, lay2, 'r3s'), view(s2_ref, lay2, 'b3'),
                      k=3, pad=1, h=h4, cout_w=w4)              # (8, 4)
    g = dot(view(s2_ref, lay2, 's'), act3)                      # (B, W/4), rows pre-avg'd
    pooled = jnp.sum(g, axis=-1, keepdims=True)                 # (B, 1)
    o_ref[...] = 1.0 / (1.0 + jnp.exp(-pooled))                 # single full-block store


# ---------------------------------------------------------------------------
# Pallas wrapper (one launch; 3 auto-DMA inputs + 2 overlapped manual-DMA inputs)
# ---------------------------------------------------------------------------
def discriminator_conv_forward(x, consts, layouts):
    B = x.shape[0]
    x2d = x.reshape(B * SEQ_LEN, INPUT_SIZE).astype(jnp.float32)
    slab1 = consts['slab1']
    r1s = consts['r1s']
    slab2 = consts['slab2']
    r2slab = consts['r2slab']

    kernel = functools.partial(
        _disc_fused_kernel,
        lay1=layouts['slab1'], lay2=layouts['slab2'], layr2=layouts['r2slab'],
        eps=LN_EPS, slope=LRELU_SLOPE,
        h1=SEQ_LEN, h2=SEQ_LEN // 2, h4=SEQ_LEN // 4,
        c1w=8 * INPUT_SIZE, c2w2=32 * (INPUT_SIZE // 2), w4=INPUT_SIZE // 4)

    return pl.pallas_call(
        kernel,
        out_shape=jax.ShapeDtypeStruct((B, 1), jnp.float32),
        grid=(1,),
        in_specs=[
            pl.BlockSpec(x2d.shape, lambda i: (0, 0)),
            pl.BlockSpec(slab1.shape, lambda i: (0, 0)),
            pl.BlockSpec(r1s.shape, lambda i: (0, 0)),
            pl.BlockSpec(memory_space=pl.ANY),    # stage-2/3 small-constant slab (HBM)
            pl.BlockSpec(memory_space=pl.ANY),    # stacked conv2 weight slab (HBM)
        ],
        out_specs=pl.BlockSpec((B, 1), lambda i: (0, 0)),
        scratch_shapes=[
            pltpu.VMEM(slab2.shape, jnp.float32),
            pltpu.VMEM(r2slab.shape, jnp.float32),
            pltpu.SemaphoreType.DMA((2,)),
        ],
    )(x2d, slab1, r1s, slab2, r2slab)


# ---------------------------------------------------------------------------
# Host-side (one-time) construction of the packed constant slabs
# ---------------------------------------------------------------------------
def _pool_row_matrix(B, H):
    # (B*H/2, B*H): per-batch averaging of adjacent y rows (0.5, 0.5).
    L = np.zeros((B * (H // 2), B * H), np.float32)
    for b in range(B):
        for yo in range(H // 2):
            L[b * (H // 2) + yo, b * H + 2 * yo] = 0.5
            L[b * (H // 2) + yo, b * H + 2 * yo + 1] = 0.5
    return L


def _pool_lane_matrix(C, W):
    # (C*W, C*W/2): per-channel averaging of adjacent x lanes.
    P = np.zeros((C * W, C * (W // 2)), np.float32)
    for c in range(C):
        for xo in range(W // 2):
            P[c * W + 2 * xo, c * (W // 2) + xo] = 0.5
            P[c * W + 2 * xo + 1, c * (W // 2) + xo] = 0.5
    return P


def _skip_lane_matrix(W, C):
    # (W, C*W/2): x-average of the raw input, broadcast over all C output channels.
    Q = np.zeros((W, C * (W // 2)), np.float32)
    for c in range(C):
        for xo in range(W // 2):
            Q[2 * xo, c * (W // 2) + xo] = 0.5
            Q[2 * xo + 1, c * (W // 2) + xo] = 0.5
    return Q


def _group_mean_matrix(C, W):
    # (C*W, C*W): block-diagonal ones/W -> per-(row, channel) mean over the W lanes.
    A = np.zeros((C * W, C * W), np.float32)
    for c in range(C):
        A[c * W:(c + 1) * W, c * W:(c + 1) * W] = 1.0 / W
    return A


def _band_weight_matrix_stacked(w, W, pad):
    # PyTorch conv weight (Cout, Cin, K, K) -> lane-stacked banded matrices
    # (Cin*W, K*Cout*W):  R[ci*W + x', ky*Cout*W + co*W + x] = w[co, ci, ky, x'-x+pad]
    # so  (t @ R)[:, ky-block]  is the full x-shift + channel contraction of tap row ky.
    Cout, Cin, K, _ = w.shape
    R = np.zeros((Cin, W, K, Cout, W), np.float32)
    for ky in range(K):
        for xp in range(W):
            for x in range(W):
                dx = xp - x + pad
                if 0 <= dx < K:
                    R[:, xp, ky, :, x] = w[:, :, ky, dx].T
    return R.reshape(Cin * W, K * Cout * W)


def _head_pool_matrix(B, H4, W4):
    # (B, B*H4): per-batch row averaging with the 1/(H4*W4) global-mean factor folded in.
    S = np.zeros((B, B * H4), np.float32)
    for b in range(B):
        S[b, b * H4:(b + 1) * H4] = 1.0 / (H4 * W4)
    return S


def _pack_slab(entries, lanes, align=8):
    # Stack 2-D constants along sublanes (each aligned to 8 rows), lane-pad to `lanes`.
    layout = {}
    rows = 0
    for name, arr in entries:
        arr = np.asarray(arr, np.float32)
        assert arr.ndim == 2 and arr.shape[1] <= lanes, (name, arr.shape, lanes)
        layout[name] = (rows, arr.shape)
        rows += ((arr.shape[0] + align - 1) // align) * align
    rows = max(rows, align)
    slab = np.zeros((rows, lanes), np.float32)
    for name, arr in entries:
        arr = np.asarray(arr, np.float32)
        off, _ = layout[name]
        slab[off:off + arr.shape[0], :arr.shape[1]] = arr
    return slab, layout


def build_constants(p):
    """One-time host-side transform of the PyTorch-style parameters into packed slabs."""
    B, H, W = BATCH, SEQ_LEN, INPUT_SIZE
    H2, W2 = H // 2, W // 2
    H4, W4 = H2 // 2, W2 // 2
    w1 = np.asarray(p['conv1_w'], np.float32)   # (8, 1, 7, 7)
    w2 = np.asarray(p['conv2_w'], np.float32)   # (32, 8, 3, 3)
    w3 = np.asarray(p['conv3_w'], np.float32)   # (1, 32, 3, 3)
    C1, C2 = w1.shape[0], w2.shape[0]

    slab1_entries = [
        ('ln1_w', np.asarray(p['ln1_w'], np.float32).reshape(1, W)),
        ('ln1_b', np.asarray(p['ln1_b'], np.float32).reshape(1, W)),
        ('b1', np.repeat(np.asarray(p['conv1_b'], np.float32), W)[None, :]),
        ('l1', _pool_row_matrix(B, H)),
        ('q1', _skip_lane_matrix(W, C1)),
        ('p1', _pool_lane_matrix(C1, W)),
    ]
    slab2_entries = [
        ('a2', _group_mean_matrix(C1, W2)),
        ('ln2_w', np.tile(np.asarray(p['ln2_w'], np.float32), C1)[None, :]),
        ('ln2_b', np.tile(np.asarray(p['ln2_b'], np.float32), C1)[None, :]),
        ('l2', _pool_row_matrix(B, H2)),
        ('p2', _pool_lane_matrix(C2, W2)),
        ('a3', _group_mean_matrix(C2, W4)),
        ('ln3_w', np.tile(np.asarray(p['ln3_w'], np.float32), C2)[None, :]),
        ('ln3_b', np.tile(np.asarray(p['ln3_b'], np.float32), C2)[None, :]),
        ('r3s', _band_weight_matrix_stacked(w3, W4, 1)),
        ('b3', np.asarray(p['conv3_b'], np.float32).reshape(1, 1)),
        ('s', _head_pool_matrix(B, H4, W4)),
    ]
    r2s = _band_weight_matrix_stacked(w2, W2, 1)                 # (64, 768)
    r2_entries = [
        ('r2s', r2s),
        ('b2', np.repeat(np.asarray(p['conv2_b'], np.float32), W2)[None, :]),
    ]
    r1s = _band_weight_matrix_stacked(w1, W, 3)                  # (16, 896)

    slab1, lay1 = _pack_slab(slab1_entries, lanes=128)
    slab2, lay2 = _pack_slab(slab2_entries, lanes=128)
    r2slab, layr2 = _pack_slab(r2_entries, lanes=r2s.shape[1])

    consts = {'slab1': jnp.asarray(slab1), 'r1s': jnp.asarray(r1s),
              'slab2': jnp.asarray(slab2), 'r2slab': jnp.asarray(r2slab)}
    layouts = {'slab1': lay1, 'slab2': lay2, 'r2slab': layr2}
    return consts, layouts


# ---------------------------------------------------------------------------
# Deterministic parameter init (mirrors weights_init semantics)
# ---------------------------------------------------------------------------
def init_params(key):
    ks = jax.random.split(key, 9)
    p = {}
    p['ln1_w'] = 1.0 + 0.02 * jax.random.normal(ks[0], (INPUT_SIZE,), jnp.float32)
    p['ln1_b'] = jnp.zeros((INPUT_SIZE,), jnp.float32)
    p['conv1_w'] = 0.02 * jax.random.normal(ks[1], (8, 1, 7, 7), jnp.float32)
    b1 = 1.0 / (1 * 7 * 7) ** 0.5
    p['conv1_b'] = jax.random.uniform(ks[2], (8,), jnp.float32, -b1, b1)

    p['ln2_w'] = 1.0 + 0.02 * jax.random.normal(ks[3], (INPUT_SIZE // 2,), jnp.float32)
    p['ln2_b'] = jnp.zeros((INPUT_SIZE // 2,), jnp.float32)
    p['conv2_w'] = 0.02 * jax.random.normal(ks[4], (32, 8, 3, 3), jnp.float32)
    b2 = 1.0 / (8 * 3 * 3) ** 0.5
    p['conv2_b'] = jax.random.uniform(ks[5], (32,), jnp.float32, -b2, b2)

    p['ln3_w'] = 1.0 + 0.02 * jax.random.normal(ks[6], (INPUT_SIZE // 4,), jnp.float32)
    p['ln3_b'] = jnp.zeros((INPUT_SIZE // 4,), jnp.float32)
    p['conv3_w'] = 0.02 * jax.random.normal(ks[7], (1, 32, 3, 3), jnp.float32)
    b3 = 1.0 / (32 * 3 * 3) ** 0.5
    p['conv3_b'] = jax.random.uniform(ks[8], (1,), jnp.float32, -b3, b3)
    return p


# ---------------------------------------------------------------------------
# Pure-JAX reference (uses lax.conv) for a correctness cross-check
# ---------------------------------------------------------------------------
def reference_forward(x, p):
    B = x.shape[0]
    x = x.reshape(B, 1, SEQ_LEN, INPUT_SIZE).astype(jnp.float32)

    def ln(t, w, b):
        mu = jnp.mean(t, axis=-1, keepdims=True)
        var = jnp.mean((t - mu) ** 2, axis=-1, keepdims=True)
        return (t - mu) / jnp.sqrt(var + LN_EPS) * w + b

    def conv(t, w, b, pad):
        y = lax.conv_general_dilated(t, w, (1, 1), [(pad, pad), (pad, pad)],
                                     dimension_numbers=('NCHW', 'OIHW', 'NCHW'),
                                     precision=lax.Precision.HIGHEST)
        return y + b[None, :, None, None]

    def lrelu(t):
        return jnp.where(t > 0, t, LRELU_SLOPE * t)

    def avgpool2(t):
        b_, c_, h_, w_ = t.shape
        return t.reshape(b_, c_, h_ // 2, 2, w_ // 2, 2).mean(axis=(3, 5))

    out1 = avgpool2(lrelu(conv(ln(x, p['ln1_w'], p['ln1_b']), p['conv1_w'], p['conv1_b'], 3)))
    inp2 = avgpool2(x) + out1
    out2 = avgpool2(lrelu(conv(ln(inp2, p['ln2_w'], p['ln2_b']), p['conv2_w'], p['conv2_b'], 1)))
    o3 = lrelu(conv(ln(out2, p['ln3_w'], p['ln3_b']), p['conv3_w'], p['conv3_b'], 1))
    pooled = jnp.mean(o3, axis=(2, 3)).reshape(B, 1)
    return 1.0 / (1.0 + jnp.exp(-pooled))


if __name__ == "__main__":
    key = jax.random.PRNGKey(0)
    kx, kp = jax.random.split(key)
    params = init_params(kp)
    consts, layouts = build_constants(params)
    x = jax.random.normal(kx, (BATCH, SEQ_LEN, INPUT_SIZE), jnp.float32)

    fwd = jax.jit(functools.partial(discriminator_conv_forward, layouts=layouts))
    out = jax.block_until_ready(fwd(x, consts))

    ref = reference_forward(x, params)
    assert out.shape == (BATCH, 1), out.shape
    if not jnp.allclose(out, ref, atol=5e-4, rtol=1e-3):
        raise AssertionError(f"Pallas output {out} does not match reference {ref}")
    print("KERNEL_OK")
</pallas_src>

<mosaic_0001>
module attributes {stable_mosaic.version = 11 : i64} {
  func.func @_disc_fused_kernel(%arg0: i32, %arg1: memref<32x16xf32, #tpu.memory_space<vmem>>, %arg2: memref<184x128xf32, #tpu.memory_space<vmem>>, %arg3: memref<16x896xf32, #tpu.memory_space<vmem>>, %arg4: memref<632x128xf32, #tpu.memory_space<any>>, %arg5: memref<72x768xf32, #tpu.memory_space<any>>, %arg6: memref<2x1xf32, #tpu.memory_space<vmem>>, %arg7: memref<632x128xf32, #tpu.memory_space<vmem>>, %arg8: memref<72x768xf32, #tpu.memory_space<vmem>>, %arg9: memref<2x!tpu.dma_semaphore, #tpu.memory_space<semaphore_mem>>) attributes {dimension_semantics = [#tpu.dimension_semantics<arbitrary>], iteration_bounds = array<i64: 1>, scalar_prefetch = 0 : i64, scratch_operands = 3 : i64, tpu.core_type = #tpu.core_type<tc>, window_params = [{pipeline_mode = #tpu.pipeline_mode<synchronous>, transform_indices = @transform_0, window_bounds = array<i64: 32, 16>}, {pipeline_mode = #tpu.pipeline_mode<synchronous>, transform_indices = @transform_1, window_bounds = array<i64: 184, 128>}, {pipeline_mode = #tpu.pipeline_mode<synchronous>, transform_indices = @transform_2, window_bounds = array<i64: 16, 896>}, {}, {}, {pipeline_mode = #tpu.pipeline_mode<synchronous>, transform_indices = @transform_5, window_bounds = array<i64: 2, 1>}]} {
    %c0_i32 = arith.constant 0 : i32
    %0 = tpu.memref_slice %arg9[%c0_i32] : memref<2x!tpu.dma_semaphore, #tpu.memory_space<semaphore_mem>> -> memref<1x!tpu.dma_semaphore, #tpu.memory_space<semaphore_mem>>
    %1 = tpu.memref_squeeze %0 : memref<1x!tpu.dma_semaphore, #tpu.memory_space<semaphore_mem>> -> memref<!tpu.dma_semaphore, #tpu.memory_space<semaphore_mem>>
    tpu.enqueue_dma source(%arg4 : memref<632x128xf32, #tpu.memory_space<any>>) target(%arg7 : memref<632x128xf32, #tpu.memory_space<vmem>>) target_semaphore(%1 : memref<!tpu.dma_semaphore, #tpu.memory_space<semaphore_mem>>)
    %c1_i32 = arith.constant 1 : i32
    %2 = tpu.memref_slice %arg9[%c1_i32] : memref<2x!tpu.dma_semaphore, #tpu.memory_space<semaphore_mem>> -> memref<1x!tpu.dma_semaphore, #tpu.memory_space<semaphore_mem>>
    %3 = tpu.memref_squeeze %2 : memref<1x!tpu.dma_semaphore, #tpu.memory_space<semaphore_mem>> -> memref<!tpu.dma_semaphore, #tpu.memory_space<semaphore_mem>>
    tpu.enqueue_dma source(%arg5 : memref<72x768xf32, #tpu.memory_space<any>>) target(%arg8 : memref<72x768xf32, #tpu.memory_space<vmem>>) target_semaphore(%3 : memref<!tpu.dma_semaphore, #tpu.memory_space<semaphore_mem>>)
    %c0 = arith.constant 0 : index
    %c0_0 = arith.constant 0 : index
    %4 = vector.load %arg1[%c0, %c0_0] : memref<32x16xf32, #tpu.memory_space<vmem>>, vector<32x16xf32>
    %c0_1 = arith.constant 0 : index
    %c0_2 = arith.constant 0 : index
    %5 = vector.load %arg2[%c0_1, %c0_2] : memref<184x128xf32, #tpu.memory_space<vmem>>, vector<1x16xf32>
    %c8 = arith.constant 8 : index
    %c0_3 = arith.constant 0 : index
    %6 = vector.load %arg2[%c8, %c0_3] : memref<184x128xf32, #tpu.memory_space<vmem>>, vector<1x16xf32>
    %cst = arith.constant dense<0.000000e+00> : vector<32xf32>
    %7 = vector.multi_reduction <add>, %4, %cst [1] : vector<32x16xf32> to vector<32xf32>
    %8 = vector.shape_cast %7 : vector<32xf32> to vector<32x1xf32>
    %cst_4 = arith.constant 1.600000e+01 : f32
    %9 = vector.broadcast %cst_4 : f32 to vector<32x1xf32>
    %10 = arith.divf %8, %9 : vector<32x1xf32>
    %11 = vector.broadcast %10 : vector<32x1xf32> to vector<32x16xf32>
    %12 = arith.subf %4, %11 : vector<32x16xf32>
    %13 = arith.mulf %12, %12 : vector<32x16xf32>
    %cst_5 = arith.constant dense<0.000000e+00> : vector<32xf32>
    %14 = vector.multi_reduction <add>, %13, %cst_5 [1] : vector<32x16xf32> to vector<32xf32>
    %15 = vector.shape_cast %14 : vector<32xf32> to vector<32x1xf32>
    %cst_6 = arith.constant 1.600000e+01 : f32
    %16 = vector.broadcast %cst_6 : f32 to vector<32x1xf32>
    %17 = arith.divf %15, %16 : vector<32x1xf32>
    %cst_7 = arith.constant 9.99999997E-7 : f32
    %18 = vector.broadcast %cst_7 : f32 to vector<32x1xf32>
    %19 = arith.addf %17, %18 : vector<32x1xf32>
    %20 = math.rsqrt %19 : vector<32x1xf32>
    %21 = vector.broadcast %20 : vector<32x1xf32> to vector<32x16xf32>
    %22 = arith.mulf %12, %21 : vector<32x16xf32>
    %23 = vector.broadcast %5 : vector<1x16xf32> to vector<32x16xf32>
    %24 = arith.mulf %22, %23 : vector<32x16xf32>
    %25 = vector.broadcast %6 : vector<1x16xf32> to vector<32x16xf32>
    %26 = arith.addf %24, %25 : vector<32x16xf32>
    %c0_8 = arith.constant 0 : index
    %c0_9 = arith.constant 0 : index
    %27 = vector.load %arg3[%c0_8, %c0_9] : memref<16x896xf32, #tpu.memory_space<vmem>>, vector<16x896xf32>
    %c16 = arith.constant 16 : index
    %c0_10 = arith.constant 0 : index
    %28 = vector.load %arg2[%c16, %c0_10] : memref<184x128xf32, #tpu.memory_space<vmem>>, vector<1x128xf32>
    %cst_11 = arith.constant dense<0.000000e+00> : vector<32x896xf32>
    %29 = tpu.matmul %26, %27, %cst_11 {dimension_numbers = #tpu.dot_dimension_numbers<[1], [0], [0], [1], [0, 0, 1, 1], [], []>} : vector<32x16xf32>, vector<16x896xf32>, vector<32x896xf32> -> vector<32x896xf32>
    %30 = tpu.iota {dimensions = array<i32: 0>} : vector<32x1xi32>
    %c15_i32 = arith.constant 15 : i32
    %31 = vector.broadcast %c15_i32 : i32 to vector<32x1xi32>
    %32 = arith.andi %30, %31 : vector<32x1xi32>
    %33 = vector.extract_strided_slice %29 {offsets = [0, 0], sizes = [32, 128], strides = [1, 1]} : vector<32x896xf32> to vector<32x128xf32>
    %c3_i32 = arith.constant 3 : i32
    %34 = tpu.dynamic_rotate %33 by %c3_i32 dim 0 : vector<32x128xf32>, i32 -> vector<32x128xf32>
    %c3_i32_12 = arith.constant 3 : i32
    %35 = vector.broadcast %c3_i32_12 : i32 to vector<32x1xi32>
    %36 = arith.cmpi sge, %32, %35 : vector<32x1xi32>
    %c19_i32 = arith.constant 19 : i32
    %37 = vector.broadcast %c19_i32 : i32 to vector<32x1xi32>
    %38 = arith.cmpi slt, %32, %37 : vector<32x1xi32>
    %39 = arith.andi %36, %38 : vector<32x1xi1>
    %cst_13 = arith.constant 0.000000e+00 : f32
    %40 = vector.shape_cast %39 : vector<32x1xi1> to vector<32x1xi1>
    %41 = vector.broadcast %40 : vector<32x1xi1> to vector<32x128xi1>
    %42 = vector.broadcast %cst_13 : f32 to vector<32x128xf32>
    %43 = arith.select %41, %34, %42 : vector<32x128xi1>, vector<32x128xf32>
    %44 = vector.extract_strided_slice %29 {offsets = [0, 128], sizes = [32, 128], strides = [1, 1]} : vector<32x896xf32> to vector<32x128xf32>
    %c2_i32 = arith.constant 2 : i32
    %45 = tpu.dynamic_rotate %44 by %c2_i32 dim 0 : vector<32x128xf32>, i32 -> vector<32x128xf32>
    %c2_i32_14 = arith.constant 2 : i32
    %46 = vector.broadcast %c2_i32_14 : i32 to vector<32x1xi32>
    %47 = arith.cmpi sge, %32, %46 : vector<32x1xi32>
    %c18_i32 = arith.constant 18 : i32
    %48 = vector.broadcast %c18_i32 : i32 to vector<32x1xi32>
    %49 = arith.cmpi slt, %32, %48 : vector<32x1xi32>
    %50 = arith.andi %47, %49 : vector<32x1xi1>
    %cst_15 = arith.constant 0.000000e+00 : f32
    %51 = vector.shape_cast %50 : vector<32x1xi1> to vector<32x1xi1>
    %52 = vector.broadcast %51 : vector<32x1xi1> to vector<32x128xi1>
    %53 = vector.broadcast %cst_15 : f32 to vector<32x128xf32>
    %54 = arith.select %52, %45, %53 : vector<32x128xi1>, vector<32x128xf32>
    %55 = vector.extract_strided_slice %29 {offsets = [0, 256], sizes = [32, 128], strides = [1, 1]} : vector<32x896xf32> to vector<32x128xf32>
    %c1_i32_16 = arith.constant 1 : i32
    %56 = tpu.dynamic_rotate %55 by %c1_i32_16 dim 0 : vector<32x128xf32>, i32 -> vector<32x128xf32>
    %c1_i32_17 = arith.constant 1 : i32
    %57 = vector.broadcast %c1_i32_17 : i32 to vector<32x1xi32>
    %58 = arith.cmpi sge, %32, %57 : vector<32x1xi32>
    %c17_i32 = arith.constant 17 : i32
    %59 = vector.broadcast %c17_i32 : i32 to vector<32x1xi32>
    %60 = arith.cmpi slt, %32, %59 : vector<32x1xi32>
    %61 = arith.andi %58, %60 : vector<32x1xi1>
    %cst_18 = arith.constant 0.000000e+00 : f32
    %62 = vector.shape_cast %61 : vector<32x1xi1> to vector<32x1xi1>
    %63 = vector.broadcast %62 : vector<32x1xi1> to vector<32x128xi1>
    %64 = vector.broadcast %cst_18 : f32 to vector<32x128xf32>
    %65 = arith.select %63, %56, %64 : vector<32x128xi1>, vector<32x128xf32>
    %66 = vector.extract_strided_slice %29 {offsets = [0, 384], sizes = [32, 128], strides = [1, 1]} : vector<32x896xf32> to vector<32x128xf32>
    %67 = vector.extract_strided_slice %29 {offsets = [0, 512], sizes = [32, 128], strides = [1, 1]} : vector<32x896xf32> to vector<32x128xf32>
    %c31_i32 = arith.constant 31 : i32
    %68 = tpu.dynamic_rotate %67 by %c31_i32 dim 0 : vector<32x128xf32>, i32 -> vector<32x128xf32>
    %c-1_i32 = arith.constant -1 : i32
    %69 = vector.broadcast %c-1_i32 : i32 to vector<32x1xi32>
    %70 = arith.cmpi sge, %32, %69 : vector<32x1xi32>
    %c15_i32_19 = arith.constant 15 : i32
    %71 = vector.broadcast %c15_i32_19 : i32 to vector<32x1xi32>
    %72 = arith.cmpi slt, %32, %71 : vector<32x1xi32>
    %73 = arith.andi %70, %72 : vector<32x1xi1>
    %cst_20 = arith.constant 0.000000e+00 : f32
    %74 = vector.shape_cast %73 : vector<32x1xi1> to vector<32x1xi1>
    %75 = vector.broadcast %74 : vector<32x1xi1> to vector<32x128xi1>
    %76 = vector.broadcast %cst_20 : f32 to vector<32x128xf32>
    %77 = arith.select %75, %68, %76 : vector<32x128xi1>, vector<32x128xf32>
    %78 = vector.extract_strided_slice %29 {offsets = [0, 640], sizes = [32, 128], strides = [1, 1]} : vector<32x896xf32> to vector<32x128xf32>
    %c30_i32 = arith.constant 30 : i32
    %79 = tpu.dynamic_rotate %78 by %c30_i32 dim 0 : vector<32x128xf32>, i32 -> vector<32x128xf32>
    %c-2_i32 = arith.constant -2 : i32
    %80 = vector.broadcast %c-2_i32 : i32 to vector<32x1xi32>
    %81 = arith.cmpi sge, %32, %80 : vector<32x1xi32>
    %c14_i32 = arith.constant 14 : i32
    %82 = vector.broadcast %c14_i32 : i32 to vector<32x1xi32>
    %83 = arith.cmpi slt, %32, %82 : vector<32x1xi32>
    %84 = arith.andi %81, %83 : vector<32x1xi1>
    %cst_21 = arith.constant 0.000000e+00 : f32
    %85 = vector.shape_cast %84 : vector<32x1xi1> to vector<32x1xi1>
    %86 = vector.broadcast %85 : vector<32x1xi1> to vector<32x128xi1>
    %87 = vector.broadcast %cst_21 : f32 to vector<32x128xf32>
    %88 = arith.select %86, %79, %87 : vector<32x128xi1>, vector<32x128xf32>
    %89 = vector.extract_strided_slice %29 {offsets = [0, 768], sizes = [32, 128], strides = [1, 1]} : vector<32x896xf32> to vector<32x128xf32>
    %c29_i32 = arith.constant 29 : i32
    %90 = tpu.dynamic_rotate %89 by %c29_i32 dim 0 : vector<32x128xf32>, i32 -> vector<32x128xf32>
    %c-3_i32 = arith.constant -3 : i32
    %91 = vector.broadcast %c-3_i32 : i32 to vector<32x1xi32>
    %92 = arith.cmpi sge, %32, %91 : vector<32x1xi32>
    %c13_i32 = arith.constant 13 : i32
    %93 = vector.broadcast %c13_i32 : i32 to vector<32x1xi32>
    %94 = arith.cmpi slt, %32, %93 : vector<32x1xi32>
    %95 = arith.andi %92, %94 : vector<32x1xi1>
    %cst_22 = arith.constant 0.000000e+00 : f32
    %96 = vector.shape_cast %95 : vector<32x1xi1> to vector<32x1xi1>
    %97 = vector.broadcast %96 : vector<32x1xi1> to vector<32x128xi1>
    %98 = vector.broadcast %cst_22 : f32 to vector<32x128xf32>
    %99 = arith.select %97, %90, %98 : vector<32x128xi1>, vector<32x128xf32>
    %100 = arith.addf %43, %54 : vector<32x128xf32>
    %101 = arith.addf %65, %66 : vector<32x128xf32>
    %102 = arith.addf %77, %88 : vector<32x128xf32>
    %103 = arith.addf %100, %101 : vector<32x128xf32>
    %104 = arith.addf %102, %99 : vector<32x128xf32>
    %105 = arith.addf %103, %104 : vector<32x128xf32>
    %106 = vector.broadcast %28 : vector<1x128xf32> to vector<32x128xf32>
    %107 = arith.addf %105, %106 : vector<32x128xf32>
    %cst_23 = arith.constant 0.000000e+00 : f32
    %108 = vector.broadcast %cst_23 : f32 to vector<32x128xf32>
    %109 = arith.cmpf ogt, %107, %108 : vector<32x128xf32>
    %cst_24 = arith.constant 2.000000e-01 : f32
    %110 = vector.broadcast %cst_24 : f32 to vector<32x128xf32>
    %111 = arith.mulf %110, %107 : vector<32x128xf32>
    %112 = arith.select %109, %107, %111 : vector<32x128xi1>, vector<32x128xf32>
    %c24 = arith.constant 24 : index
    %c0_25 = arith.constant 0 : index
    %113 = vector.load %arg2[%c24, %c0_25] : memref<184x128xf32, #tpu.memory_space<vmem>>, vector<16x32xf32>
    %cst_26 = arith.constant dense<0.000000e+00> : vector<16x128xf32>
    %114 = tpu.matmul %113, %112, %cst_26 {dimension_numbers = #tpu.dot_dimension_numbers<[1], [0], [0], [1], [0, 0, 1, 1], [], []>} : vector<16x32xf32>, vector<32x128xf32>, vector<16x128xf32> -> vector<16x128xf32>
    %c56 = arith.constant 56 : index
    %c0_27 = arith.constant 0 : index
    %115 = vector.load %arg2[%c56, %c0_27] : memref<184x128xf32, #tpu.memory_space<vmem>>, vector<128x64xf32>
    %cst_28 = arith.constant dense<0.000000e+00> : vector<16x64xf32>
    %116 = tpu.matmul %114, %115, %cst_28 {dimension_numbers = #tpu.dot_dimension_numbers<[1], [0], [0], [1], [0, 0, 1, 1], [], []>} : vector<16x128xf32>, vector<128x64xf32>, vector<16x64xf32> -> vector<16x64xf32>
    %cst_29 = arith.constant dense<0.000000e+00> : vector<16x16xf32>
    %117 = tpu.matmul %113, %4, %cst_29 {dimension_numbers = #tpu.dot_dimension_numbers<[1], [0], [0], [1], [0, 0, 1, 1], [], []>} : vector<16x32xf32>, vector<32x16xf32>, vector<16x16xf32> -> vector<16x16xf32>
    %c40 = arith.constant 40 : index
    %c0_30 = arith.constant 0 : index
    %118 = vector.load %arg2[%c40, %c0_30] : memref<184x128xf32, #tpu.memory_space<vmem>>, vector<16x64xf32>
    %cst_31 = arith.constant dense<0.000000e+00> : vector<16x64xf32>
    %119 = tpu.matmul %117, %118, %cst_31 {dimension_numbers = #tpu.dot_dimension_numbers<[1], [0], [0], [1], [0, 0, 1, 1], [], []>} : vector<16x16xf32>, vector<16x64xf32>, vector<16x64xf32> -> vector<16x64xf32>
    %120 = arith.addf %116, %119 : vector<16x64xf32>
    %c0_i32_32 = arith.constant 0 : i32
    %121 = tpu.memref_slice %arg9[%c0_i32_32] : memref<2x!tpu.dma_semaphore, #tpu.memory_space<semaphore_mem>> -> memref<1x!tpu.dma_semaphore, #tpu.memory_space<semaphore_mem>>
    %122 = tpu.memref_squeeze %121 : memref<1x!tpu.dma_semaphore, #tpu.memory_space<semaphore_mem>> -> memref<!tpu.dma_semaphore, #tpu.memory_space<semaphore_mem>>
    tpu.wait_dma2 semaphore(%122 : memref<!tpu.dma_semaphore, #tpu.memory_space<semaphore_mem>>) src(%arg4 : memref<632x128xf32, #tpu.memory_space<any>>) dst(%arg7 : memref<632x128xf32, #tpu.memory_space<vmem>>)
    %c1_i32_33 = arith.constant 1 : i32
    %123 = tpu.memref_slice %arg9[%c1_i32_33] : memref<2x!tpu.dma_semaphore, #tpu.memory_space<semaphore_mem>> -> memref<1x!tpu.dma_semaphore, #tpu.memory_space<semaphore_mem>>
    %124 = tpu.memref_squeeze %123 : memref<1x!tpu.dma_semaphore, #tpu.memory_space<semaphore_mem>> -> memref<!tpu.dma_semaphore, #tpu.memory_space<semaphore_mem>>
    tpu.wait_dma2 semaphore(%124 : memref<!tpu.dma_semaphore, #tpu.memory_space<semaphore_mem>>) src(%arg5 : memref<72x768xf32, #tpu.memory_space<any>>) dst(%arg8 : memref<72x768xf32, #tpu.memory_space<vmem>>)
    %c0_34 = arith.constant 0 : index
    %c0_35 = arith.constant 0 : index
    %125 = vector.load %arg7[%c0_34, %c0_35] : memref<632x128xf32, #tpu.memory_space<vmem>>, vector<64x64xf32>
    %c64 = arith.constant 64 : index
    %c0_36 = arith.constant 0 : index
    %126 = vector.load %arg7[%c64, %c0_36] : memref<632x128xf32, #tpu.memory_space<vmem>>, vector<1x64xf32>
    %c72 = arith.constant 72 : index
    %c0_37 = arith.constant 0 : index
    %127 = vector.load %arg7[%c72, %c0_37] : memref<632x128xf32, #tpu.memory_space<vmem>>, vector<1x64xf32>
    %cst_38 = arith.constant dense<0.000000e+00> : vector<16x64xf32>
    %128 = tpu.matmul %120, %125, %cst_38 {dimension_numbers = #tpu.dot_dimension_numbers<[1], [0], [0], [1], [0, 0, 1, 1], [], []>} : vector<16x64xf32>, vector<64x64xf32>, vector<16x64xf32> -> vector<16x64xf32>
    %129 = arith.subf %120, %128 : vector<16x64xf32>
    %130 = arith.mulf %129, %129 : vector<16x64xf32>
    %cst_39 = arith.constant dense<0.000000e+00> : vector<16x64xf32>
    %131 = tpu.matmul %130, %125, %cst_39 {dimension_numbers = #tpu.dot_dimension_numbers<[1], [0], [0], [1], [0, 0, 1, 1], [], []>} : vector<16x64xf32>, vector<64x64xf32>, vector<16x64xf32> -> vector<16x64xf32>
    %cst_40 = arith.constant 9.99999997E-7 : f32
    %132 = vector.broadcast %cst_40 : f32 to vector<16x64xf32>
    %133 = arith.addf %131, %132 : vector<16x64xf32>
    %134 = math.rsqrt %133 : vector<16x64xf32>
    %135 = arith.mulf %129, %134 : vector<16x64xf32>
    %136 = vector.broadcast %126 : vector<1x64xf32> to vector<16x64xf32>
    %137 = arith.mulf %135, %136 : vector<16x64xf32>
    %138 = vector.broadcast %127 : vector<1x64xf32> to vector<16x64xf32>
    %139 = arith.addf %137, %138 : vector<16x64xf32>
    %c0_41 = arith.constant 0 : index
    %c0_42 = arith.constant 0 : index
    %140 = vector.load %arg8[%c0_41, %c0_42] : memref<72x768xf32, #tpu.memory_space<vmem>>, vector<64x768xf32>
    %c64_43 = arith.constant 64 : index
    %c0_44 = arith.constant 0 : index
    %141 = vector.load %arg8[%c64_43, %c0_44] : memref<72x768xf32, #tpu.memory_space<vmem>>, vector<1x256xf32>
    %cst_45 = arith.constant dense<0.000000e+00> : vector<16x768xf32>
    %142 = tpu.matmul %139, %140, %cst_45 {dimension_numbers = #tpu.dot_dimension_numbers<[1], [0], [0], [1], [0, 0, 1, 1], [], []>} : vector<16x64xf32>, vector<64x768xf32>, vector<16x768xf32> -> vector<16x768xf32>
    %143 = tpu.iota {dimensions = array<i32: 0>} : vector<16x1xi32>
    %c7_i32 = arith.constant 7 : i32
    %144 = vector.broadcast %c7_i32 : i32 to vector<16x1xi32>
    %145 = arith.andi %143, %144 : vector<16x1xi32>
    %146 = vector.extract_strided_slice %142 {offsets = [0, 0], sizes = [16, 256], strides = [1, 1]} : vector<16x768xf32> to vector<16x256xf32>
    %c1_i32_46 = arith.constant 1 : i32
    %147 = tpu.dynamic_rotate %146 by %c1_i32_46 dim 0 : vector<16x256xf32>, i32 -> vector<16x256xf32>
    %c1_i32_47 = arith.constant 1 : i32
    %148 = vector.broadcast %c1_i32_47 : i32 to vector<16x1xi32>
    %149 = arith.cmpi sge, %145, %148 : vector<16x1xi32>
    %c9_i32 = arith.constant 9 : i32
    %150 = vector.broadcast %c9_i32 : i32 to vector<16x1xi32>
    %151 = arith.cmpi slt, %145, %150 : vector<16x1xi32>
    %152 = arith.andi %149, %151 : vector<16x1xi1>
    %cst_48 = arith.constant 0.000000e+00 : f32
    %153 = vector.shape_cast %152 : vector<16x1xi1> to vector<16x1xi1>
    %154 = vector.broadcast %153 : vector<16x1xi1> to vector<16x256xi1>
    %155 = vector.broadcast %cst_48 : f32 to vector<16x256xf32>
    %156 = arith.select %154, %147, %155 : vector<16x256xi1>, vector<16x256xf32>
    %157 = vector.extract_strided_slice %142 {offsets = [0, 256], sizes = [16, 256], strides = [1, 1]} : vector<16x768xf32> to vector<16x256xf32>
    %158 = vector.extract_strided_slice %142 {offsets = [0, 512], sizes = [16, 256], strides = [1, 1]} : vector<16x768xf32> to vector<16x256xf32>
    %c15_i32_49 = arith.constant 15 : i32
    %159 = tpu.dynamic_rotate %158 by %c15_i32_49 dim 0 : vector<16x256xf32>, i32 -> vector<16x256xf32>
    %c-1_i32_50 = arith.constant -1 : i32
    %160 = vector.broadcast %c-1_i32_50 : i32 to vector<16x1xi32>
    %161 = arith.cmpi sge, %145, %160 : vector<16x1xi32>
    %c7_i32_51 = arith.constant 7 : i32
    %162 = vector.broadcast %c7_i32_51 : i32 to vector<16x1xi32>
    %163 = arith.cmpi slt, %145, %162 : vector<16x1xi32>
    %164 = arith.andi %161, %163 : vector<16x1xi1>
    %cst_52 = arith.constant 0.000000e+00 : f32
    %165 = vector.shape_cast %164 : vector<16x1xi1> to vector<16x1xi1>
    %166 = vector.broadcast %165 : vector<16x1xi1> to vector<16x256xi1>
    %167 = vector.broadcast %cst_52 : f32 to vector<16x256xf32>
    %168 = arith.select %166, %159, %167 : vector<16x256xi1>, vector<16x256xf32>
    %169 = arith.addf %156, %157 : vector<16x256xf32>
    %170 = arith.addf %169, %168 : vector<16x256xf32>
    %171 = vector.broadcast %141 : vector<1x256xf32> to vector<16x256xf32>
    %172 = arith.addf %170, %171 : vector<16x256xf32>
    %cst_53 = arith.constant 0.000000e+00 : f32
    %173 = vector.broadcast %cst_53 : f32 to vector<16x256xf32>
    %174 = arith.cmpf ogt, %172, %173 : vector<16x256xf32>
    %cst_54 = arith.constant 2.000000e-01 : f32
    %175 = vector.broadcast %cst_54 : f32 to vector<16x256xf32>
    %176 = arith.mulf %175, %172 : vector<16x256xf32>
    %177 = arith.select %174, %172, %176 : vector<16x256xi1>, vector<16x256xf32>
    %c80 = arith.constant 80 : index
    %c0_55 = arith.constant 0 : index
    %178 = vector.load %arg7[%c80, %c0_55] : memref<632x128xf32, #tpu.memory_space<vmem>>, vector<8x16xf32>
    %cst_56 = arith.constant dense<0.000000e+00> : vector<8x256xf32>
    %179 = tpu.matmul %178, %177, %cst_56 {dimension_numbers = #tpu.dot_dimension_numbers<[1], [0], [0], [1], [0, 0, 1, 1], [], []>} : vector<8x16xf32>, vector<16x256xf32>, vector<8x256xf32> -> vector<8x256xf32>
    %c88 = arith.constant 88 : index
    %c0_57 = arith.constant 0 : index
    %180 = vector.load %arg7[%c88, %c0_57] : memref<632x128xf32, #tpu.memory_space<vmem>>, vector<256x128xf32>
    %cst_58 = arith.constant dense<0.000000e+00> : vector<8x128xf32>
    %181 = tpu.matmul %179, %180, %cst_58 {dimension_numbers = #tpu.dot_dimension_numbers<[1], [0], [0], [1], [0, 0, 1, 1], [], []>} : vector<8x256xf32>, vector<256x128xf32>, vector<8x128xf32> -> vector<8x128xf32>
    %c344 = arith.constant 344 : index
    %c0_59 = arith.constant 0 : index
    %182 = vector.load %arg7[%c344, %c0_59] : memref<632x128xf32, #tpu.memory_space<vmem>>, vector<128x128xf32>
    %c472 = arith.constant 472 : index
    %c0_60 = arith.constant 0 : index
    %183 = vector.load %arg7[%c472, %c0_60] : memref<632x128xf32, #tpu.memory_space<vmem>>, vector<1x128xf32>
    %c480 = arith.constant 480 : index
    %c0_61 = arith.constant 0 : index
    %184 = vector.load %arg7[%c480, %c0_61] : memref<632x128xf32, #tpu.memory_space<vmem>>, vector<1x128xf32>
    %cst_62 = arith.constant dense<0.000000e+00> : vector<8x128xf32>
    %185 = tpu.matmul %181, %182, %cst_62 {dimension_numbers = #tpu.dot_dimension_numbers<[1], [0], [0], [1], [0, 0, 1, 1], [], []>} : vector<8x128xf32>, vector<128x128xf32>, vector<8x128xf32> -> vector<8x128xf32>
    %186 = arith.subf %181, %185 : vector<8x128xf32>
    %187 = arith.mulf %186, %186 : vector<8x128xf32>
    %cst_63 = arith.constant dense<0.000000e+00> : vector<8x128xf32>
    %188 = tpu.matmul %187, %182, %cst_63 {dimension_numbers = #tpu.dot_dimension_numbers<[1], [0], [0], [1], [0, 0, 1, 1], [], []>} : vector<8x128xf32>, vector<128x128xf32>, vector<8x128xf32> -> vector<8x128xf32>
    %cst_64 = arith.constant 9.99999997E-7 : f32
    %189 = vector.broadcast %cst_64 : f32 to vector<8x128xf32>
    %190 = arith.addf %188, %189 : vector<8x128xf32>
    %191 = math.rsqrt %190 : vector<8x128xf32>
    %192 = arith.mulf %186, %191 : vector<8x128xf32>
    %193 = vector.broadcast %183 : vector<1x128xf32> to vector<8x128xf32>
    %194 = arith.mulf %192, %193 : vector<8x128xf32>
    %195 = vector.broadcast %184 : vector<1x128xf32> to vector<8x128xf32>
    %196 = arith.addf %194, %195 : vector<8x128xf32>
    %c488 = arith.constant 488 : index
    %c0_65 = arith.constant 0 : index
    %197 = vector.load %arg7[%c488, %c0_65] : memref<632x128xf32, #tpu.memory_space<vmem>>, vector<128x12xf32>
    %c616 = arith.constant 616 : index
    %c0_66 = arith.constant 0 : index
    %198 = vector.load %arg7[%c616, %c0_66] : memref<632x128xf32, #tpu.memory_space<vmem>>, vector<1x1xf32>
    %cst_67 = arith.constant dense<0.000000e+00> : vector<8x12xf32>
    %199 = tpu.matmul %196, %197, %cst_67 {dimension_numbers = #tpu.dot_dimension_numbers<[1], [0], [0], [1], [0, 0, 1, 1], [], []>} : vector<8x128xf32>, vector<128x12xf32>, vector<8x12xf32> -> vector<8x12xf32>
    %200 = tpu.iota {dimensions = array<i32: 0>} : vector<8x1xi32>
    %c3_i32_68 = arith.constant 3 : i32
    %201 = vector.broadcast %c3_i32_68 : i32 to vector<8x1xi32>
    %202 = arith.andi %200, %201 : vector<8x1xi32>
    %203 = vector.extract_strided_slice %199 {offsets = [0, 0], sizes = [8, 4], strides = [1, 1]} : vector<8x12xf32> to vector<8x4xf32>
    %c1_i32_69 = arith.constant 1 : i32
    %204 = tpu.dynamic_rotate %203 by %c1_i32_69 dim 0 : vector<8x4xf32>, i32 -> vector<8x4xf32>
    %c1_i32_70 = arith.constant 1 : i32
    %205 = vector.broadcast %c1_i32_70 : i32 to vector<8x1xi32>
    %206 = arith.cmpi sge, %202, %205 : vector<8x1xi32>
    %c5_i32 = arith.constant 5 : i32
    %207 = vector.broadcast %c5_i32 : i32 to vector<8x1xi32>
    %208 = arith.cmpi slt, %202, %207 : vector<8x1xi32>
    %209 = arith.andi %206, %208 : vector<8x1xi1>
    %cst_71 = arith.constant 0.000000e+00 : f32
    %210 = vector.shape_cast %209 : vector<8x1xi1> to vector<8x1xi1>
    %211 = vector.broadcast %210 : vector<8x1xi1> to vector<8x4xi1>
    %212 = vector.broadcast %cst_71 : f32 to vector<8x4xf32>
    %213 = arith.select %211, %204, %212 : vector<8x4xi1>, vector<8x4xf32>
    %214 = vector.extract_strided_slice %199 {offsets = [0, 4], sizes = [8, 4], strides = [1, 1]} : vector<8x12xf32> to vector<8x4xf32>
    %215 = vector.extract_strided_slice %199 {offsets = [0, 8], sizes = [8, 4], strides = [1, 1]} : vector<8x12xf32> to vector<8x4xf32>
    %c7_i32_72 = arith.constant 7 : i32
    %216 = tpu.dynamic_rotate %215 by %c7_i32_72 dim 0 : vector<8x4xf32>, i32 -> vector<8x4xf32>
    %c-1_i32_73 = arith.constant -1 : i32
    %217 = vector.broadcast %c-1_i32_73 : i32 to vector<8x1xi32>
    %218 = arith.cmpi sge, %202, %217 : vector<8x1xi32>
    %c3_i32_74 = arith.constant 3 : i32
    %219 = vector.broadcast %c3_i32_74 : i32 to vector<8x1xi32>
    %220 = arith.cmpi slt, %202, %219 : vector<8x1xi32>
    %221 = arith.andi %218, %220 : vector<8x1xi1>
    %cst_75 = arith.constant 0.000000e+00 : f32
    %222 = vector.shape_cast %221 : vector<8x1xi1> to vector<8x1xi1>
    %223 = vector.broadcast %222 : vector<8x1xi1> to vector<8x4xi1>
    %224 = vector.broadcast %cst_75 : f32 to vector<8x4xf32>
    %225 = arith.select %223, %216, %224 : vector<8x4xi1>, vector<8x4xf32>
    %226 = arith.addf %213, %214 : vector<8x4xf32>
    %227 = arith.addf %226, %225 : vector<8x4xf32>
    %228 = vector.broadcast %198 : vector<1x1xf32> to vector<8x4xf32>
    %229 = arith.addf %227, %228 : vector<8x4xf32>
    %cst_76 = arith.constant 0.000000e+00 : f32
    %230 = vector.broadcast %cst_76 : f32 to vector<8x4xf32>
    %231 = arith.cmpf ogt, %229, %230 : vector<8x4xf32>
    %cst_77 = arith.constant 2.000000e-01 : f32
    %232 = vector.broadcast %cst_77 : f32 to vector<8x4xf32>
    %233 = arith.mulf %232, %229 : vector<8x4xf32>
    %234 = arith.select %231, %229, %233 : vector<8x4xi1>, vector<8x4xf32>
    %c624 = arith.constant 624 : index
    %c0_78 = arith.constant 0 : index
    %235 = vector.load %arg7[%c624, %c0_78] : memref<632x128xf32, #tpu.memory_space<vmem>>, vector<2x8xf32>
    %cst_79 = arith.constant dense<0.000000e+00> : vector<2x4xf32>
    %236 = tpu.matmul %235, %234, %cst_79 {dimension_numbers = #tpu.dot_dimension_numbers<[1], [0], [0], [1], [0, 0, 1, 1], [], []>} : vector<2x8xf32>, vector<8x4xf32>, vector<2x4xf32> -> vector<2x4xf32>
    %cst_80 = arith.constant dense<0.000000e+00> : vector<2xf32>
    %237 = vector.multi_reduction <add>, %236, %cst_80 [1] : vector<2x4xf32> to vector<2xf32>
    %238 = vector.shape_cast %237 : vector<2xf32> to vector<2x1xf32>
    %cst_81 = arith.constant 0.000000e+00 : f32
    %239 = vector.broadcast %cst_81 : f32 to vector<2x1xf32>
    %240 = arith.subf %239, %238 : vector<2x1xf32>
    %241 = math.exp %240 : vector<2x1xf32>
    %cst_82 = arith.constant 1.000000e+00 : f32
    %242 = vector.broadcast %cst_82 : f32 to vector<2x1xf32>
    %243 = arith.addf %242, %241 : vector<2x1xf32>
    %cst_83 = arith.constant 1.000000e+00 : f32
    %244 = vector.broadcast %cst_83 : f32 to vector<2x1xf32>
    %245 = arith.divf %244, %243 : vector<2x1xf32>
    %c0_84 = arith.constant 0 : index
    %c0_85 = arith.constant 0 : index
    %246 = vector.load %arg6[%c0_84, %c0_85] : memref<2x1xf32, #tpu.memory_space<vmem>>, vector<2x1xf32>
    tpu.vector_store %arg6[%c0_84, %c0_85], %245 {strides = array<i32>} : memref<2x1xf32, #tpu.memory_space<vmem>>, vector<2x1xf32>,
    return
  }
  func.func @transform_0(%arg0: i32) -> (i32, i32) {
    %c0_i32 = arith.constant 0 : i32
    %c0_i32_0 = arith.constant 0 : i32
    %c0_i32_1 = arith.constant 0 : i32
    return %c0_i32, %c0_i32_0 : i32, i32
  }
  func.func @transform_1(%arg0: i32) -> (i32, i32) {
    %c0_i32 = arith.constant 0 : i32
    %c0_i32_0 = arith.constant 0 : i32
    %c0_i32_1 = arith.constant 0 : i32
    return %c0_i32, %c0_i32_0 : i32, i32
  }
  func.func @transform_2(%arg0: i32) -> (i32, i32) {
    %c0_i32 = arith.constant 0 : i32
    %c0_i32_0 = arith.constant 0 : i32
    %c0_i32_1 = arith.constant 0 : i32
    return %c0_i32, %c0_i32_0 : i32, i32
  }
  func.func @transform_5(%arg0: i32) -> (i32, i32) {
    %c0_i32 = arith.constant 0 : i32
    %c0_i32_0 = arith.constant 0 : i32
    %c0_i32_1 = arith.constant 0 : i32
    return %c0_i32, %c0_i32_0 : i32, i32
  }
}

</mosaic_0001>

<llo_original>
// kernel: discriminator_conv_forward.1
$region0: #{discriminator_conv_forward.1}
  #allocation0 [shape = 'u32[]', space=smem, size = 0x4, offset = 0x4, fixed_abs, tag = 'smem constant byte address 0x4 - core index']
  #allocation1 [shape = 'u32[72,128]{1,0:T(1,128)}', space=vmem, size = 0x9000, scoped, tag = 'internal scratch']
  #allocation2 [shape = 'f32[632,128]{1,0:T(8,128)}', space=vmem, size = 0x4f000, scoped, tag = 'scratch operand']
  #allocation3 [shape = 'f32[72,768]{1,0:T(8,128)}', space=vmem, size = 0x36000, scoped, tag = 'scratch operand']
  #allocation4 [shape = 's32[2]{0}', space=sflag, size = 0x8, scoped, tag = 'scratch operand']
  #allocation10 [shape = 's32[]', space=sflag, size = 0x4, offset = 0, fixed_abs, tag = 'sflag constant byte address 0x0 - dummy sync flag']
  #allocation11 [shape = 's32[]', space=sflag, size = 0x4, offset = 0, fixed_abs, tag = 'sflag constant byte address 0x0 - dummy sync flag']
  #allocation12 [shape = 'u32[]', space=smem, size = 0x4, offset = 0x44, fixed_abs, tag = 'smem constant byte address 0x44 - assertion arg 0']
  #allocation13 [shape = 'u32[]', space=smem, size = 0x4, offset = 0x48, fixed_abs, tag = 'smem constant byte address 0x48 - assertion arg 1']
  #allocation14 [shape = 's32[]', space=sflag, size = 0x4, offset = 0, fixed_abs, tag = 'sflag constant byte address 0x0 - dummy sync flag']
  #allocation15 [shape = 's32[]', space=sflag, size = 0x4, offset = 0, fixed_abs, tag = 'sflag constant byte address 0x0 - dummy sync flag']
  %s0 = inlined_call_operand.hbm [shape: f32[32,16], index: 0, kind: input, shape index: {}]
  %s1 = inlined_call_operand.hbm [shape: f32[184,128], index: 1, kind: input, shape index: {}]
  %s2 = inlined_call_operand.hbm [shape: f32[16,896], index: 2, kind: input, shape index: {}]
  %s3 = inlined_call_operand.hbm [shape: f32[632,128], index: 3, kind: input, shape index: {}]
  %s4 = inlined_call_operand.hbm [shape: f32[72,768], index: 4, kind: input, shape index: {}]
  %s5 = inlined_call_operand.vmem [shape: f32[2,1], index: 5, kind: output, shape index: {}]
  %s6 = sld [smem:[#allocation0]]
  $region42: #{discriminator_conv_forward.1} parent=0
    _
  %s8 = ssub.s32 1, %s6
  %s9 = scalar_select 0, %s8, %s6
  $region1: #{discriminator_conv_forward.1} parent=0
    #allocation5 [shape = 'u8[16384]{0}', space=vmem, size = 0x4000, scoped, tag = 'input window, operand 0, single buffered']
    #allocation6 [shape = 's32[1]{0}', space=sflag, size = 0x4, scoped, tag = 'scoped memory for discriminator_conv_forward.1']
    #allocation7 [shape = 'u8[94208]{0}', space=vmem, size = 0x17000, scoped, tag = 'input window, operand 1, single buffered']
    #allocation8 [shape = 's32[1]{0}', space=sflag, size = 0x4, scoped, tag = 'scoped memory for discriminator_conv_forward.1']
    #allocation9 [shape = 'u8[57344]{0}', space=vmem, size = 0xe000, scoped, tag = 'input window, operand 2, single buffered']
    %10 = vsyncpa [#allocation6], 0
    %11 = vsyncpa [#allocation8], 0
    // Predicated region
    $region2: #{discriminator_conv_forward.1} parent=1 // pred_check
      _
    $region3: #{discriminator_conv_forward.1} parent=1 // pred_check_branch
      %13 = sbr.rel (0) target = $region5
    $region4: #{discriminator_conv_forward.1} parent=1 // pred_region
      %15 = vsyncadd [#allocation6], 0
      %s16 = sshll.u32 %s0, 4
      %s17 = int_to_ptr.hbm [resolvable:$true] %s16
      %s18 = sshll.u32 [#allocation5], 4
      %s19 = int_to_ptr.vmem [resolvable:$true] %s18
      %24 = dma.hbm_to_vmem [thread:$0]  %s17, 512, %s19, [#allocation6], 128, 128, 8
    $region5: #{discriminator_conv_forward.1} parent=1 // pred_fallthru
      _
    // Predicated region
    $region6: #{discriminator_conv_forward.1} parent=1 // pred_check
      _
    $region7: #{discriminator_conv_forward.1} parent=1 // pred_check_branch
      %26 = sbr.rel (0) target = $region9
    $region8: #{discriminator_conv_forward.1} parent=1 // pred_region
      %28 = vsyncadd [#allocation8], 0
      %s29 = sshll.u32 %s1, 4
      %s30 = int_to_ptr.hbm [resolvable:$true] %s29
      %s31 = sshll.u32 [#allocation7], 4
      %s32 = int_to_ptr.vmem [resolvable:$true] %s31
      %37 = dma.hbm_to_vmem [thread:$0]  %s30, 2944, %s32, [#allocation8], 128, 128, 8
    $region9: #{discriminator_conv_forward.1} parent=1 // pred_fallthru
      _
    // Predicated region
    $region10: #{discriminator_conv_forward.1} parent=1 // pred_check
      _
    $region11: #{discriminator_conv_forward.1} parent=1 // pred_check_branch
      %39 = sbr.rel (0) target = $region13
    $region12: #{discriminator_conv_forward.1} parent=1 // pred_region
      %41 = vsyncadd [#allocation8], 0
      %s42 = sshll.u32 %s2, 4
      %s43 = int_to_ptr.hbm [resolvable:$true] %s42
      %s44 = sshll.u32 [#allocation9], 4
      %s45 = int_to_ptr.vmem [resolvable:$true] %s44
      %50 = dma.hbm_to_vmem [thread:$0]  %s43, 1792, %s45, [#allocation8], 896, 896, 56
    $region13: #{discriminator_conv_forward.1} parent=1 // pred_fallthru
      _
    // Predicated region
    $region14: #{discriminator_conv_forward.1} parent=1 // pred_check
      _
    $region15: #{discriminator_conv_forward.1} parent=1 // pred_check_branch
      %52 = sbr.rel (0) target = $region17
    $region16: #{discriminator_conv_forward.1} parent=1 // pred_region
      %54 = dma.done [#allocation6], 512
    $region17: #{discriminator_conv_forward.1} parent=1 // pred_fallthru
      _
    // Predicated region
    $region18: #{discriminator_conv_forward.1} parent=1 // pred_check
      _
    $region19: #{discriminator_conv_forward.1} parent=1 // pred_check_branch
      %56 = sbr.rel (0) target = $region21
    $region20: #{discriminator_conv_forward.1} parent=1 // pred_region
      %58 = dma.done [#allocation8], 2944
    $region21: #{discriminator_conv_forward.1} parent=1 // pred_fallthru
      _
    // Predicated region
    $region22: #{discriminator_conv_forward.1} parent=1 // pred_check
      _
    $region23: #{discriminator_conv_forward.1} parent=1 // pred_check_branch
      %60 = sbr.rel (0) target = $region25
    $region24: #{discriminator_conv_forward.1} parent=1 // pred_region
      %62 = dma.done [#allocation8], 1792
    $region25: #{discriminator_conv_forward.1} parent=1 // pred_fallthru
      _
    // Predicated region
    $region26: #{discriminator_conv_forward.1} parent=1 // pred_check
      _
    $region27: #{discriminator_conv_forward.1} parent=1 // pred_check_branch
      %64 = sbr.rel target = $region29
    $region28: #{discriminator_conv_forward.1} parent=1 // pred_region
      %65 = sst [smem:[#allocation12]] [#allocation11]
      %66 = sst [smem:[#allocation13]] [#allocation10]
    $region29: #{discriminator_conv_forward.1} parent=1 // pred_fallthru
      _
    %68 = shalt.err (0)
    %s70 = sshll.u32 %s3, 4
    %s71 = int_to_ptr.hbm [resolvable:$true] %s70
    %s72 = sshll.u32 [#allocation2], 4
    %s73 = int_to_ptr.vmem [resolvable:$true] %s72
    %75 = dma.hbm_to_vmem [thread:$0]  %s71, 10112, %s73, [#allocation4]
    %s76 = scalar_lea.sflag [#allocation4], 1
    // Predicated region
    $region30: #{discriminator_conv_forward.1} parent=1 // pred_check
      _
    $region31: #{discriminator_conv_forward.1} parent=1 // pred_check_branch
      %78 = sbr.rel target = $region33
    $region32: #{discriminator_conv_forward.1} parent=1 // pred_region
      %79 = sst [smem:[#allocation12]] [#allocation15]
      %80 = sst [smem:[#allocation13]] [#allocation14]
    $region33: #{discriminator_conv_forward.1} parent=1 // pred_fallthru
      _
    %82 = shalt.err (0)
    %s84 = sshll.u32 %s4, 4
    %s85 = int_to_ptr.hbm [resolvable:$true] %s84
    %s86 = sshll.u32 [#allocation3], 4
    %s87 = int_to_ptr.vmem [resolvable:$true] %s86
    %89 = dma.hbm_to_vmem [thread:$0]  %s85, 6912, %s87, %s76
    %v90 = vld [vmem:[#allocation5] sm:$0xff]
    %v91 = vld [vmem:[#allocation5 + $0x8] sm:$0xff]
    %v92 = vld [vmem:[#allocation5 + $0x10] sm:$0xff]
    %v93 = vld [vmem:[#allocation5 + $0x18] sm:$0xff]
    %v94 = vld [vmem:[#allocation7] sm:$0x1]
    %v95 = vld [vmem:[#allocation7 + $0x8] sm:$0x1]
    %vm96 = vcmask 130048
    %v97 = vsel %vm96, %v90, 0.0
    %98 = vadd.xlane.f32.xlu0 %v97
    %v99 = vpop.xlane.xlu0 %98
    %v100 = vsel %vm96, %v91, 0.0
    %101 = vadd.xlane.f32.xlu0 %v100
    %v102 = vpop.xlane.xlu0 %101
    %v103 = vsel %vm96, %v92, 0.0
    %104 = vadd.xlane.f32.xlu0 %v103
    %v105 = vpop.xlane.xlu0 %104
    %v106 = vsel %vm96, %v93, 0.0
    %107 = vadd.xlane.f32.xlu0 %v106
    %v108 = vpop.xlane.xlu0 %107
    %v109 = vrcp.pop 16.0
    %v110 = vmul.f32 16.0, %v109
    %v111 = vsub.f32 1.0, %v110
    %v112 = vmul.f32 %v109, %v111
    %v113 = vadd.f32 %v109, %v112
    %vm114 = vweird.f32 %v109
    %v115 = vsel %vm114, %v109, %v113
    %v116 = vmul.f32 %v99, %v115
    %v117 = vmul.f32 %v102, %v115
    %v118 = vmul.f32 %v105, %v115
    %v119 = vmul.f32 %v108, %v115
    %v120 = vsub.f32 %v90, %v116
    %v121 = vsub.f32 %v91, %v117
    %v122 = vsub.f32 %v92, %v118
    %v123 = vsub.f32 %v93, %v119
    %v124 = vmul.f32 %v120, %v120
    %v125 = vmul.f32 %v121, %v121
    %v126 = vmul.f32 %v122, %v122
    %v127 = vmul.f32 %v123, %v123
    %v128 = vsel %vm96, %v124, 0.0
    %129 = vadd.xlane.f32.xlu0 %v128
    %v130 = vpop.xlane.xlu0 %129
    %v131 = vsel %vm96, %v125, 0.0
    %132 = vadd.xlane.f32.xlu0 %v131
    %v133 = vpop.xlane.xlu0 %132
    %v134 = vsel %vm96, %v126, 0.0
    %135 = vadd.xlane.f32.xlu0 %v134
    %v136 = vpop.xlane.xlu0 %135
    %v137 = vsel %vm96, %v127, 0.0
    %138 = vadd.xlane.f32.xlu0 %v137
    %v139 = vpop.xlane.xlu0 %138
    %v140 = vmul.f32 %v130, %v115
    %v141 = vmul.f32 %v133, %v115
    %v142 = vmul.f32 %v136, %v115
    %v143 = vmul.f32 %v139, %v115
    %v144 = vadd.f32 %v140, 1e-06
    %v145 = vadd.f32 %v141, 1e-06
    %v146 = vadd.f32 %v142, 1e-06
    %v147 = vadd.f32 %v143, 1e-06
    %v148 = vrsqrt.pop %v144
    %v149 = vmul.f32 %v148, %v144
    %v150 = vmul.f32 %v149, %v148
    %v151 = vmul.f32 0.5, %v150
    %v152 = vsub.f32 1.5, %v151
    %v153 = vmul.f32 %v148, %v152
    %vm154 = vweird.f32 %v144
    %vm155 = vweird.f32 %v148
    %vm156 = vmor %vm154, %vm155
    %v157 = vsel %vm156, %v148, %v153
    %v158 = vrsqrt.pop %v145
    %v159 = vmul.f32 %v158, %v145
    %v160 = vmul.f32 %v159, %v158
    %v161 = vmul.f32 0.5, %v160
    %v162 = vsub.f32 1.5, %v161
    %v163 = vmul.f32 %v158, %v162
    %vm164 = vweird.f32 %v145
    %vm165 = vweird.f32 %v158
    %vm166 = vmor %vm164, %vm165
    %v167 = vsel %vm166, %v158, %v163
    %v168 = vrsqrt.pop %v146
    %v169 = vmul.f32 %v168, %v146
    %v170 = vmul.f32 %v169, %v168
    %v171 = vmul.f32 0.5, %v170
    %v172 = vsub.f32 1.5, %v171
    %v173 = vmul.f32 %v168, %v172
    %vm174 = vweird.f32 %v146
    %vm175 = vweird.f32 %v168
    %vm176 = vmor %vm174, %vm175
    %v177 = vsel %vm176, %v168, %v173
    %v178 = vrsqrt.pop %v147
    %v179 = vmul.f32 %v178, %v147
    %v180 = vmul.f32 %v179, %v178
    %v181 = vmul.f32 0.5, %v180
    %v182 = vsub.f32 1.5, %v181
    %v183 = vmul.f32 %v178, %v182
    %vm184 = vweird.f32 %v147
    %vm185 = vweird.f32 %v178
    %vm186 = vmor %vm184, %vm185
    %v187 = vsel %vm186, %v178, %v183
    %v188 = vmul.f32 %v120, %v157
    %v189 = vmul.f32 %v121, %v167
    %v190 = vmul.f32 %v122, %v177
    %v191 = vmul.f32 %v123, %v187
    %v192 = vperm.slane %v94, 0
    %v193 = vmul.f32 %v188, %v192
    %v194 = vmul.f32 %v189, %v192
    %v195 = vmul.f32 %v190, %v192
    %v196 = vmul.f32 %v191, %v192
    %v197 = vperm.slane %v95, 0
    %v198 = vadd.f32 %v193, %v197
    %v199 = vadd.f32 %v194, %v197
    %v200 = vadd.f32 %v195, %v197
    %v201 = vadd.f32 %v196, %v197
    %v202 = vld [vmem:[#allocation9] sm:$0xff]
    %v203 = vld [vmem:[#allocation9 + $0x8] sm:$0xff]
    %v204 = vld [vmem:[#allocation9 + $0x10] sm:$0xff]
    %v205 = vld [vmem:[#allocation9 + $0x18] sm:$0xff]
    %v206 = vld [vmem:[#allocation9 + $0x20] sm:$0xff]
    %v207 = vld [vmem:[#allocation9 + $0x28] sm:$0xff]
    %v208 = vld [vmem:[#allocation9 + $0x30] sm:$0xff]
    %v209 = vld [vmem:[#allocation9 + $0x38] sm:$0xff]
    %v210 = vld [vmem:[#allocation9 + $0x40] sm:$0xff]
    %v211 = vld [vmem:[#allocation9 + $0x48] sm:$0xff]
    %v212 = vld [vmem:[#allocation9 + $0x50] sm:$0xff]
    %v213 = vld [vmem:[#allocation9 + $0x58] sm:$0xff]
    %v214 = vld [vmem:[#allocation9 + $0x60] sm:$0xff]
    %v215 = vld [vmem:[#allocation9 + $0x68] sm:$0xff]
    %v216 = vld [vmem:[#allocation7 + $0x10] sm:$0x1]
    %v218 = vsel %vm96, %v198, 0
    %v221 = vsel %vm96, %v199, 0
    %v224 = vsel %vm96, %v200, 0
    %v227 = vsel %vm96, %v201, 0
    %229 = vmatpush.msra.mxu0 0.0
    %230 = vmatpush.msra.mxu0 0.0
    %231 = vmatpush.msra.mxu0 0.0
    %232 = vmatpush.msra.mxu0 0.0
    %233 = vmatpush.msra.mxu0 0.0
    %234 = vmatpush.msra.mxu0 0.0
    %235 = vmatpush.msra.mxu0 0.0
    %236 = vmatpush.msra.mxu0 0.0
    %237 = vmatpush.msra.mxu0 0.0
    %238 = vmatpush.msra.mxu0 0.0
    %239 = vmatpush.msra.mxu0 0.0
    %240 = vmatpush.msra.mxu0 0.0
    %241 = vmatpush.msra.mxu0 0.0
    %242 = vmatpush.msra.mxu0 0.0
    %243 = vmatpush.msra.mxu0 %v209
    %244 = vmatpush.msra.mxu0 %v202
    %245 = vmatmul.f32.gmra.mxu0 %v218
    %v246 = vpop.f32.mrf.mxu0
    %v247 = vadd.f32 0.0, %v246
    %248 = vmatmul.f32.gmra.mxu0 %v221
    %v249 = vpop.f32.mrf.mxu0
    %v250 = vadd.f32 0.0, %v249
    %251 = vmatmul.f32.gmra.mxu0 %v224
    %v252 = vpop.f32.mrf.mxu0
    %v253 = vadd.f32 0.0, %v252
    %254 = vmatmul.f32.gmra.mxu0 %v227
    %v255 = vpop.f32.mrf.mxu0
    %v256 = vadd.f32 0.0, %v255
    %257 = vdwg.mxu0
    %258 = vmatpush.msra.mxu0 0.0
    %259 = vmatpush.msra.mxu0 0.0
    %260 = vmatpush.msra.mxu0 0.0
    %261 = vmatpush.msra.mxu0 0.0
    %262 = vmatpush.msra.mxu0 0.0
    %263 = vmatpush.msra.mxu0 0.0
    %264 = vmatpush.msra.mxu0 0.0
    %265 = vmatpush.msra.mxu0 0.0
    %266 = vmatpush.msra.mxu0 0.0
    %267 = vmatpush.msra.mxu0 0.0
    %268 = vmatpush.msra.mxu0 0.0
    %269 = vmatpush.msra.mxu0 0.0
    %270 = vmatpush.msra.mxu0 0.0
    %271 = vmatpush.msra.mxu0 0.0
    %272 = vmatpush.msra.mxu0 %v210
    %273 = vmatpush.msra.mxu0 %v203
    %274 = vmatmul.f32.gmra.mxu0 %v218
    %v275 = vpop.f32.mrf.mxu0
    %v276 = vadd.f32 0.0, %v275
    %277 = vmatmul.f32.gmra.mxu0 %v221
    %v278 = vpop.f32.mrf.mxu0
    %v279 = vadd.f32 0.0, %v278
    %280 = vmatmul.f32.gmra.mxu0 %v224
    %v281 = vpop.f32.mrf.mxu0
    %v282 = vadd.f32 0.0, %v281
    %283 = vmatmul.f32.gmra.mxu0 %v227
    %v284 = vpop.f32.mrf.mxu0
    %v285 = vadd.f32 0.0, %v284
    %286 = vdwg.mxu0
    %287 = vmatpush.msra.mxu0 0.0
    %288 = vmatpush.msra.mxu0 0.0
    %289 = vmatpush.msra.mxu0 0.0
    %290 = vmatpush.msra.mxu0 0.0
    %291 = vmatpush.msra.mxu0 0.0
    %292 = vmatpush.msra.mxu0 0.0
    %293 = vmatpush.msra.mxu0 0.0
    %294 = vmatpush.msra.mxu0 0.0
    %295 = vmatpush.msra.mxu0 0.0
    %296 = vmatpush.msra.mxu0 0.0
    %297 = vmatpush.msra.mxu0 0.0
    %298 = vmatpush.msra.mxu0 0.0
    %299 = vmatpush.msra.mxu0 0.0
    %300 = vmatpush.msra.mxu0 0.0
    %301 = vmatpush.msra.mxu0 %v211
    %302 = vmatpush.msra.mxu0 %v204
    %303 = vmatmul.f32.gmra.mxu0 %v218
    %v304 = vpop.f32.mrf.mxu0
    %v305 = vadd.f32 0.0, %v304
    %306 = vmatmul.f32.gmra.mxu0 %v221
    %v307 = vpop.f32.mrf.mxu0
    %v308 = vadd.f32 0.0, %v307
    %309 = vmatmul.f32.gmra.mxu0 %v224
    %v310 = vpop.f32.mrf.mxu0
    %v311 = vadd.f32 0.0, %v310
    %312 = vmatmul.f32.gmra.mxu0 %v227
    %v313 = vpop.f32.mrf.mxu0
    %v314 = vadd.f32 0.0, %v313
    %315 = vdwg.mxu0
    %316 = vmatpush.msra.mxu0 0.0
    %317 = vmatpush.msra.mxu0 0.0
    %318 = vmatpush.msra.mxu0 0.0
    %319 = vmatpush.msra.mxu0 0.0
    %320 = vmatpush.msra.mxu0 0.0
    %321 = vmatpush.msra.mxu0 0.0
    %322 = vmatpush.msra.mxu0 0.0
    %323 = vmatpush.msra.mxu0 0.0
    %324 = vmatpush.msra.mxu0 0.0
    %325 = vmatpush.msra.mxu0 0.0
    %326 = vmatpush.msra.mxu0 0.0
    %327 = vmatpush.msra.mxu0 0.0
    %328 = vmatpush.msra.mxu0 0.0
    %329 = vmatpush.msra.mxu0 0.0
    %330 = vmatpush.msra.mxu0 %v212
    %331 = vmatpush.msra.mxu0 %v205
    %332 = vmatmul.f32.gmra.mxu0 %v218
    %v333 = vpop.f32.mrf.mxu0
    %v334 = vadd.f32 0.0, %v333
    %335 = vmatmul.f32.gmra.mxu0 %v221
    %v336 = vpop.f32.mrf.mxu0
    %v337 = vadd.f32 0.0, %v336
    %338 = vmatmul.f32.gmra.mxu0 %v224
    %v339 = vpop.f32.mrf.mxu0
    %v340 = vadd.f32 0.0, %v339
    %341 = vmatmul.f32.gmra.mxu0 %v227
    %v342 = vpop.f32.mrf.mxu0
    %v343 = vadd.f32 0.0, %v342
    %344 = vdwg.mxu0
    %345 = vmatpush.msra.mxu0 0.0
    %346 = vmatpush.msra.mxu0 0.0
    %347 = vmatpush.msra.mxu0 0.0
    %348 = vmatpush.msra.mxu0 0.0
    %349 = vmatpush.msra.mxu0 0.0
    %350 = vmatpush.msra.mxu0 0.0
    %351 = vmatpush.msra.mxu0 0.0
    %352 = vmatpush.msra.mxu0 0.0
    %353 = vmatpush.msra.mxu0 0.0
    %354 = vmatpush.msra.mxu0 0.0
    %355 = vmatpush.msra.mxu0 0.0
    %356 = vmatpush.msra.mxu0 0.0
    %357 = vmatpush.msra.mxu0 0.0
    %358 = vmatpush.msra.mxu0 0.0
    %359 = vmatpush.msra.mxu0 %v213
    %360 = vmatpush.msra.mxu0 %v206
    %361 = vmatmul.f32.gmra.mxu0 %v218
    %v362 = vpop.f32.mrf.mxu0
    %v363 = vadd.f32 0.0, %v362
    %364 = vmatmul.f32.gmra.mxu0 %v221
    %v365 = vpop.f32.mrf.mxu0
    %v366 = vadd.f32 0.0, %v365
    %367 = vmatmul.f32.gmra.mxu0 %v224
    %v368 = vpop.f32.mrf.mxu0
    %v369 = vadd.f32 0.0, %v368
    %370 = vmatmul.f32.gmra.mxu0 %v227
    %v371 = vpop.f32.mrf.mxu0
    %v372 = vadd.f32 0.0, %v371
    %373 = vdwg.mxu0
    %374 = vmatpush.msra.mxu0 0.0
    %375 = vmatpush.msra.mxu0 0.0
    %376 = vmatpush.msra.mxu0 0.0
    %377 = vmatpush.msra.mxu0 0.0
    %378 = vmatpush.msra.mxu0 0.0
    %379 = vmatpush.msra.mxu0 0.0
    %380 = vmatpush.msra.mxu0 0.0
    %381 = vmatpush.msra.mxu0 0.0
    %382 = vmatpush.msra.mxu0 0.0
    %383 = vmatpush.msra.mxu0 0.0
    %384 = vmatpush.msra.mxu0 0.0
    %385 = vmatpush.msra.mxu0 0.0
    %386 = vmatpush.msra.mxu0 0.0
    %387 = vmatpush.msra.mxu0 0.0
    %388 = vmatpush.msra.mxu0 %v214
    %389 = vmatpush.msra.mxu0 %v207
    %390 = vmatmul.f32.gmra.mxu0 %v218
    %v391 = vpop.f32.mrf.mxu0
    %v392 = vadd.f32 0.0, %v391
    %393 = vmatmul.f32.gmra.mxu0 %v221
    %v394 = vpop.f32.mrf.mxu0
    %v395 = vadd.f32 0.0, %v394
    %396 = vmatmul.f32.gmra.mxu0 %v224
    %v397 = vpop.f32.mrf.mxu0
    %v398 = vadd.f32 0.0, %v397
    %399 = vmatmul.f32.gmra.mxu0 %v227
    %v400 = vpop.f32.mrf.mxu0
    %v401 = vadd.f32 0.0, %v400
    %402 = vdwg.mxu0
    %403 = vmatpush.msra.mxu0 0.0
    %404 = vmatpush.msra.mxu0 0.0
    %405 = vmatpush.msra.mxu0 0.0
    %406 = vmatpush.msra.mxu0 0.0
    %407 = vmatpush.msra.mxu0 0.0
    %408 = vmatpush.msra.mxu0 0.0
    %409 = vmatpush.msra.mxu0 0.0
    %410 = vmatpush.msra.mxu0 0.0
    %411 = vmatpush.msra.mxu0 0.0
    %412 = vmatpush.msra.mxu0 0.0
    %413 = vmatpush.msra.mxu0 0.0
    %414 = vmatpush.msra.mxu0 0.0
    %415 = vmatpush.msra.mxu0 0.0
    %416 = vmatpush.msra.mxu0 0.0
    %417 = vmatpush.msra.mxu0 %v215
    %418 = vmatpush.msra.mxu0 %v208
    %419 = vmatmul.f32.gmra.mxu0 %v218
    %v420 = vpop.f32.mrf.mxu0
    %v421 = vadd.f32 0.0, %v420
    %422 = vmatmul.f32.gmra.mxu0 %v221
    %v423 = vpop.f32.mrf.mxu0
    %v424 = vadd.f32 0.0, %v423
    %425 = vmatmul.f32.gmra.mxu0 %v224
    %v426 = vpop.f32.mrf.mxu0
    %v427 = vadd.f32 0.0, %v426
    %428 = vmatmul.f32.gmra.mxu0 %v227
    %v429 = vpop.f32.mrf.mxu0
    %v430 = vadd.f32 0.0, %v429
    %431 = vdwg.mxu0
    %v432 = vlaneseq
    %v433 = vshrl.u32 %v432, 7
    %v434 = vadd.s32 %v433, 8
    %v435 = vadd.s32 %v433, 16
    %v436 = vadd.s32 %v433, 24
    %v437 = vand.u32 %v433, 15
    %v438 = vand.u32 %v434, 15
    %v439 = vand.u32 %v435, 15
    %v440 = vand.u32 %v436, 15
    %v441 = vrot.slane %v247, 5
    %v442 = vrot.slane %v250, 5
    %v443 = vrot.slane %v253, 5
    %v444 = vrot.slane %v256, 5
    %vm445 = vcmp.lt.s32.totalorder %v433, 3
    %v446 = vsel %vm445, %v443, %v444
    %v447 = vsel %vm445, %v442, %v443
    %v448 = vsel %vm445, %v441, %v442
    %v449 = vsel %vm445, %v444, %v441
    %vm450 = vcmp.ge.s32.totalorder %v437, 3
    %vm451 = vcmp.ge.s32.totalorder %v438, 3
    %vm452 = vcmp.ge.s32.totalorder %v439, 3
    %vm453 = vcmp.ge.s32.totalorder %v440, 3
    %vm454 = vcmp.lt.s32.totalorder %v437, 19
    %vm455 = vcmp.lt.s32.totalorder %v438, 19
    %vm456 = vcmp.lt.s32.totalorder %v439, 19
    %vm457 = vcmp.lt.s32.totalorder %v440, 19
    %vm458 = vmand %vm450, %vm454
    %vm459 = vmand %vm451, %vm455
    %vm460 = vmand %vm452, %vm456
    %vm461 = vmand %vm453, %vm457
    %v462 = vsel %vm458, 1, 0
    %v463 = vsel %vm459, 1, 0
    %v464 = vsel %vm460, 1, 0
    %v465 = vsel %vm461, 1, 0
    %vm466 = vcmp.eq.s32.totalorder %v462, 1
    %vm467 = vcmp.eq.s32.totalorder %v463, 1
    %vm468 = vcmp.eq.s32.totalorder %v464, 1
    %vm469 = vcmp.eq.s32.totalorder %v465, 1
    %v470 = vsel %vm466, %v449, 0.0
    %v471 = vsel %vm467, %v448, 0.0
    %v472 = vsel %vm468, %v447, 0.0
    %v473 = vsel %vm469, %v446, 0.0
    %v474 = vrot.slane %v276, 6
    %v475 = vrot.slane %v279, 6
    %v476 = vrot.slane %v282, 6
    %v477 = vrot.slane %v285, 6
    %vm478 = vcmp.lt.s32.totalorder %v433, 2
    %v479 = vsel %vm478, %v476, %v477
    %v480 = vsel %vm478, %v475, %v476
    %v481 = vsel %vm478, %v474, %v475
    %v482 = vsel %vm478, %v477, %v474
    %vm483 = vcmp.ge.s32.totalorder %v437, 2
    %vm484 = vcmp.ge.s32.totalorder %v438, 2
    %vm485 = vcmp.ge.s32.totalorder %v439, 2
    %vm486 = vcmp.ge.s32.totalorder %v440, 2
    %vm487 = vcmp.lt.s32.totalorder %v437, 18
    %vm488 = vcmp.lt.s32.totalorder %v438, 18
    %vm489 = vcmp.lt.s32.totalorder %v439, 18
    %vm490 = vcmp.lt.s32.totalorder %v440, 18
    %vm491 = vmand %vm483, %vm487
    %vm492 = vmand %vm484, %vm488
    %vm493 = vmand %vm485, %vm489
    %vm494 = vmand %vm486, %vm490
    %v495 = vsel %vm491, 1, 0
    %v496 = vsel %vm492, 1, 0
    %v497 = vsel %vm493, 1, 0
    %v498 = vsel %vm494, 1, 0
    %vm499 = vcmp.eq.s32.totalorder %v495, 1
    %vm500 = vcmp.eq.s32.totalorder %v496, 1
    %vm501 = vcmp.eq.s32.totalorder %v497, 1
    %vm502 = vcmp.eq.s32.totalorder %v498, 1
    %v503 = vsel %vm499, %v482, 0.0
    %v504 = vsel %vm500, %v481, 0.0
    %v505 = vsel %vm501, %v480, 0.0
    %v506 = vsel %vm502, %v479, 0.0
    %v507 = vrot.slane %v305, 7
    %v508 = vrot.slane %v308, 7
    %v509 = vrot.slane %v311, 7
    %v510 = vrot.slane %v314, 7
    %vm511 = vcmp.lt.s32.totalorder %v433, 1
    %v512 = vsel %vm511, %v509, %v510
    %v513 = vsel %vm511, %v508, %v509
    %v514 = vsel %vm511, %v507, %v508
    %v515 = vsel %vm511, %v510, %v507
    %vm516 = vcmp.ge.s32.totalorder %v437, 1
    %vm517 = vcmp.ge.s32.totalorder %v438, 1
    %vm518 = vcmp.ge.s32.totalorder %v439, 1
    %vm519 = vcmp.ge.s32.totalorder %v440, 1
    %vm520 = vcmp.lt.s32.totalorder %v437, 17
    %vm521 = vcmp.lt.s32.totalorder %v438, 17
    %vm522 = vcmp.lt.s32.totalorder %v439, 17
    %vm523 = vcmp.lt.s32.totalorder %v440, 17
    %vm524 = vmand %vm516, %vm520
    %vm525 = vmand %vm517, %vm521
    %vm526 = vmand %vm518, %vm522
    %vm527 = vmand %vm519, %vm523
    %v528 = vsel %vm524, 1, 0
    %v529 = vsel %vm525, 1, 0
    %v530 = vsel %vm526, 1, 0
    %v531 = vsel %vm527, 1, 0
    %vm532 = vcmp.eq.s32.totalorder %v528, 1
    %vm533 = vcmp.eq.s32.totalorder %v529, 1
    %vm534 = vcmp.eq.s32.totalorder %v530, 1
    %vm535 = vcmp.eq.s32.totalorder %v531, 1
    %v536 = vsel %vm532, %v515, 0.0
    %v537 = vsel %vm533, %v514, 0.0
    %v538 = vsel %vm534, %v513, 0.0
    %v539 = vsel %vm535, %v512, 0.0
    %v540 = vrot.slane %v363, 1
    %v541 = vrot.slane %v366, 1
    %v542 = vrot.slane %v369, 1
    %v543 = vrot.slane %v372, 1
    %vm544 = vcmp.lt.s32.totalorder %v433, 7
    %v545 = vsel %vm544, %v542, %v543
    %v546 = vsel %vm544, %v541, %v542
    %v547 = vsel %vm544, %v540, %v541
    %v548 = vsel %vm544, %v543, %v540
    %vm549 = vcmp.ge.s32.totalorder %v437, 4294967295
    %vm550 = vcmp.ge.s32.totalorder %v438, 4294967295
    %vm551 = vcmp.ge.s32.totalorder %v439, 4294967295
    %vm552 = vcmp.ge.s32.totalorder %v440, 4294967295
    %vm553 = vcmp.lt.s32.totalorder %v437, 15
    %vm554 = vcmp.lt.s32.totalorder %v438, 15
    %vm555 = vcmp.lt.s32.totalorder %v439, 15
    %vm556 = vcmp.lt.s32.totalorder %v440, 15
    %vm557 = vmand %vm549, %vm553
    %vm558 = vmand %vm550, %vm554
    %vm559 = vmand %vm551, %vm555
    %vm560 = vmand %vm552, %vm556
    %v561 = vsel %vm557, 1, 0
    %v562 = vsel %vm558, 1, 0
    %v563 = vsel %vm559, 1, 0
    %v564 = vsel %vm560, 1, 0
    %vm565 = vcmp.eq.s32.totalorder %v561, 1
    %vm566 = vcmp.eq.s32.totalorder %v562, 1
    %vm567 = vcmp.eq.s32.totalorder %v563, 1
    %vm568 = vcmp.eq.s32.totalorder %v564, 1
    %v569 = vsel %vm565, %v547, 0.0
    %v570 = vsel %vm566, %v546, 0.0
    %v571 = vsel %vm567, %v545, 0.0
    %v572 = vsel %vm568, %v548, 0.0
    %v573 = vrot.slane %v392, 2
    %v574 = vrot.slane %v395, 2
    %v575 = vrot.slane %v398, 2
    %v576 = vrot.slane %v401, 2
    %vm577 = vcmp.lt.s32.totalorder %v433, 6
    %v578 = vsel %vm577, %v575, %v576
    %v579 = vsel %vm577, %v574, %v575
    %v580 = vsel %vm577, %v573, %v574
    %v581 = vsel %vm577, %v576, %v573
    %vm582 = vcmp.ge.s32.totalorder %v437, 4294967294
    %vm583 = vcmp.ge.s32.totalorder %v438, 4294967294
    %vm584 = vcmp.ge.s32.totalorder %v439, 4294967294
    %vm585 = vcmp.ge.s32.totalorder %v440, 4294967294
    %vm586 = vcmp.lt.s32.totalorder %v437, 14
    %vm587 = vcmp.lt.s32.totalorder %v438, 14
    %vm588 = vcmp.lt.s32.totalorder %v439, 14
    %vm589 = vcmp.lt.s32.totalorder %v440, 14
    %vm590 = vmand %vm582, %vm586
    %vm591 = vmand %vm583, %vm587
    %vm592 = vmand %vm584, %vm588
    %vm593 = vmand %vm585, %vm589
    %v594 = vsel %vm590, 1, 0
    %v595 = vsel %vm591, 1, 0
    %v596 = vsel %vm592, 1, 0
    %v597 = vsel %vm593, 1, 0
    %vm598 = vcmp.eq.s32.totalorder %v594, 1
    %vm599 = vcmp.eq.s32.totalorder %v595, 1
    %vm600 = vcmp.eq.s32.totalorder %v596, 1
    %vm601 = vcmp.eq.s32.totalorder %v597, 1
    %v602 = vsel %vm598, %v580, 0.0
    %v603 = vsel %vm599, %v579, 0.0
    %v604 = vsel %vm600, %v578, 0.0
    %v605 = vsel %vm601, %v581, 0.0
    %v606 = vrot.slane %v421, 3
    %v607 = vrot.slane %v424, 3
    %v608 = vrot.slane %v427, 3
    %v609 = vrot.slane %v430, 3
    %vm610 = vcmp.lt.s32.totalorder %v433, 5
    %v611 = vsel %vm610, %v608, %v609
    %v612 = vsel %vm610, %v607, %v608
    %v613 = vsel %vm610, %v606, %v607
    %v614 = vsel %vm610, %v609, %v606
    %vm615 = vcmp.ge.s32.totalorder %v437, 4294967293
    %vm616 = vcmp.ge.s32.totalorder %v438, 4294967293
    %vm617 = vcmp.ge.s32.totalorder %v439, 4294967293
    %vm618 = vcmp.ge.s32.totalorder %v440, 4294967293
    %vm619 = vcmp.lt.s32.totalorder %v437, 13
    %vm620 = vcmp.lt.s32.totalorder %v438, 13
    %vm621 = vcmp.lt.s32.totalorder %v439, 13
    %vm622 = vcmp.lt.s32.totalorder %v440, 13
    %vm623 = vmand %vm615, %vm619
    %vm624 = vmand %vm616, %vm620
    %vm625 = vmand %vm617, %vm621
    %vm626 = vmand %vm618, %vm622
    %v627 = vsel %vm623, 1, 0
    %v628 = vsel %vm624, 1, 0
    %v629 = vsel %vm625, 1, 0
    %v630 = vsel %vm626, 1, 0
    %vm631 = vcmp.eq.s32.totalorder %v627, 1
    %vm632 = vcmp.eq.s32.totalorder %v628, 1
    %vm633 = vcmp.eq.s32.totalorder %v629, 1
    %vm634 = vcmp.eq.s32.totalorder %v630, 1
    %v635 = vsel %vm631, %v613, 0.0
    %v636 = vsel %vm632, %v612, 0.0
    %v637 = vsel %vm633, %v611, 0.0
    %v638 = vsel %vm634, %v614, 0.0
    %v639 = vadd.f32 %v470, %v503
    %v640 = vadd.f32 %v471, %v504
    %v641 = vadd.f32 %v472, %v505
    %v642 = vadd.f32 %v473, %v506
    %v643 = vadd.f32 %v536, %v334
    %v644 = vadd.f32 %v537, %v337
    %v645 = vadd.f32 %v538, %v340
    %v646 = vadd.f32 %v539, %v343
    %v647 = vadd.f32 %v569, %v602
    %v648 = vadd.f32 %v570, %v603
    %v649 = vadd.f32 %v571, %v604
    %v650 = vadd.f32 %v572, %v605
    %v651 = vadd.f32 %v639, %v643
    %v652 = vadd.f32 %v640, %v644
    %v653 = vadd.f32 %v641, %v645
    %v654 = vadd.f32 %v642, %v646
    %v655 = vadd.f32 %v647, %v635
    %v656 = vadd.f32 %v648, %v636
    %v657 = vadd.f32 %v649, %v637
    %v658 = vadd.f32 %v650, %v638
    %v659 = vadd.f32 %v651, %v655
    %v660 = vadd.f32 %v652, %v656
    %v661 = vadd.f32 %v653, %v657
    %v662 = vadd.f32 %v654, %v658
    %v663 = vperm.slane %v216, 0
    %v664 = vadd.f32 %v659, %v663
    %v665 = vadd.f32 %v660, %v663
    %v666 = vadd.f32 %v661, %v663
    %v667 = vadd.f32 %v662, %v663
    %vm668 = vcmp.gt.f32.partialorder %v664, 0.0
    %vm669 = vcmp.gt.f32.partialorder %v665, 0.0
    %vm670 = vcmp.gt.f32.partialorder %v666, 0.0
    %vm671 = vcmp.gt.f32.partialorder %v667, 0.0
    %v672 = vmul.f32 %v664, 0.2
    %v673 = vmul.f32 %v665, 0.2
    %v674 = vmul.f32 %v666, 0.2
    %v675 = vmul.f32 %v667, 0.2
    %v676 = vsel %vm668, %v664, %v672
    %v677 = vsel %vm669, %v665, %v673
    %v678 = vsel %vm670, %v666, %v674
    %v679 = vsel %vm671, %v667, %v675
    %v680 = vld [vmem:[#allocation7 + $0x18] sm:$0xff]
    %v681 = vld [vmem:[#allocation7 + $0x20] sm:$0xff]
    %vm682 = vcmask 261120
    %v684 = vsel %vm682, %v680, 0
    %v687 = vsel %vm682, %v681, 0
    %689 = vmatpush.msra.mxu0 0.0
    %690 = vmatpush.msra.mxu0 0.0
    %691 = vmatpush.msra.mxu0 0.0
    %692 = vmatpush.msra.mxu0 0.0
    %693 = vmatpush.msra.mxu0 0.0
    %694 = vmatpush.msra.mxu0 0.0
    %695 = vmatpush.msra.mxu0 0.0
    %696 = vmatpush.msra.mxu0 0.0
    %697 = vmatpush.msra.mxu0 0.0
    %698 = vmatpush.msra.mxu0 0.0
    %699 = vmatpush.msra.mxu0 0.0
    %700 = vmatpush.msra.mxu0 0.0
    %701 = vmatpush.msra.mxu0 %v679
    %702 = vmatpush.msra.mxu0 %v678
    %703 = vmatpush.msra.mxu0 %v677
    %704 = vmatpush.msra.mxu0 %v676
    %705 = vmatmul.f32.gmra.mxu0 %v684
    %v706 = vpop.f32.mrf.mxu0
    %v707 = vadd.f32 0.0, %v706
    %708 = vmatmul.f32.gmra.mxu0 %v687
    %v709 = vpop.f32.mrf.mxu0
    %v710 = vadd.f32 0.0, %v709
    %711 = vdwg.mxu0
    %v712 = vld [vmem:[#allocation7 + $0x38] sm:$0xff]
    %v713 = vld [vmem:[#allocation7 + $0x40] sm:$0xff]
    %v714 = vld [vmem:[#allocation7 + $0x48] sm:$0xff]
    %v715 = vld [vmem:[#allocation7 + $0x50] sm:$0xff]
    %v716 = vld [vmem:[#allocation7 + $0x58] sm:$0xff]
    %v717 = vld [vmem:[#allocation7 + $0x60] sm:$0xff]
    %v718 = vld [vmem:[#allocation7 + $0x68] sm:$0xff]
    %v719 = vld [vmem:[#allocation7 + $0x70] sm:$0xff]
    %v720 = vld [vmem:[#allocation7 + $0x78] sm:$0xff]
    %v721 = vld [vmem:[#allocation7 + $0x80] sm:$0xff]
    %v722 = vld [vmem:[#allocation7 + $0x88] sm:$0xff]
    %v723 = vld [vmem:[#allocation7 + $0x90] sm:$0xff]
    %v724 = vld [vmem:[#allocation7 + $0x98] sm:$0xff]
    %v725 = vld [vmem:[#allocation7 + $0xa0] sm:$0xff]
    %v726 = vld [vmem:[#allocation7 + $0xa8] sm:$0xff]
    %v727 = vld [vmem:[#allocation7 + $0xb0] sm:$0xff]
    %728 = vmatpush.msra.mxu0 0.0
    %729 = vmatpush.msra.mxu0 0.0
    %730 = vmatpush.msra.mxu0 0.0
    %731 = vmatpush.msra.mxu0 0.0
    %732 = vmatpush.msra.mxu0 0.0
    %733 = vmatpush.msra.mxu0 0.0
    %734 = vmatpush.msra.mxu0 0.0
    %735 = vmatpush.msra.mxu0 0.0
    %736 = vmatpush.msra.mxu0 0.0
    %737 = vmatpush.msra.mxu0 0.0
    %738 = vmatpush.msra.mxu0 0.0
    %739 = vmatpush.msra.mxu0 0.0
    %740 = vmatpush.msra.mxu0 %v93
    %741 = vmatpush.msra.mxu0 %v92
    %742 = vmatpush.msra.mxu0 %v91
    %743 = vmatpush.msra.mxu0 %v90
    %744 = vmatmul.f32.gmra.mxu0 %v684
    %v745 = vpop.f32.mrf.mxu0
    %v746 = vadd.f32 0.0, %v745
    %747 = vmatmul.f32.gmra.mxu0 %v687
    %v748 = vpop.f32.mrf.mxu0
    %v749 = vadd.f32 0.0, %v748
    %750 = vdwg.mxu0
    %v751 = vld [vmem:[#allocation7 + $0x28] sm:$0xff]
    %v752 = vld [vmem:[#allocation7 + $0x30] sm:$0xff]
    %v754 = vsel %vm96, %v746, 0
    %v757 = vsel %vm96, %v749, 0
    %759 = vmatpush.msra.mxu0 0.0
    %760 = vmatpush.msra.mxu0 0.0
    %761 = vmatpush.msra.mxu0 0.0
    %762 = vmatpush.msra.mxu0 0.0
    %763 = vmatpush.msra.mxu0 0.0
    %764 = vmatpush.msra.mxu0 0.0
    %765 = vmatpush.msra.mxu0 0.0
    %766 = vmatpush.msra.mxu0 0.0
    %767 = vmatpush.msra.mxu0 0.0
    %768 = vmatpush.msra.mxu0 0.0
    %769 = vmatpush.msra.mxu0 0.0
    %770 = vmatpush.msra.mxu0 0.0
    %771 = vmatpush.msra.mxu0 0.0
    %772 = vmatpush.msra.mxu0 0.0
    %773 = vmatpush.msra.mxu0 %v752
    %774 = vmatpush.msra.mxu0 %v751
    %775 = vmatmul.f32.gmra.mxu0 %v754
    %v776 = vpop.f32.mrf.mxu0
    %v777 = vadd.f32 0.0, %v776
    %778 = vmatmul.f32.gmra.mxu0 %v757
    %v779 = vpop.f32.mrf.mxu0
    %v780 = vadd.f32 0.0, %v779
    %781 = vdwg.mxu0
    %782 = vmatpush.msra.mxu0 %v727
    %783 = vmatpush.msra.mxu0 %v726
    %784 = vmatpush.msra.mxu0 %v725
    %785 = vmatpush.msra.mxu0 %v724
    %786 = vmatpush.msra.mxu0 %v723
    %787 = vmatpush.msra.mxu0 %v722
    %788 = vmatpush.msra.mxu0 %v721
    %789 = vmatpush.msra.mxu0 %v720
    %790 = vmatpush.msra.mxu0 %v719
    %791 = vmatpush.msra.mxu0 %v718
    %792 = vmatpush.msra.mxu0 %v717
    %793 = vmatpush.msra.mxu0 %v716
    %794 = vmatpush.msra.mxu0 %v715
    %795 = vmatpush.msra.mxu0 %v714
    %796 = vmatpush.msra.mxu0 %v713
    %797 = vmatpush.msra.mxu0 %v712
    %798 = vmatmul.f32.gmra.mxu0 %v707
    %v799 = vpop.f32.mrf.mxu0
    %v800 = vadd.f32 %v777, %v799
    %801 = vmatmul.f32.gmra.mxu0 %v710
    %v802 = vpop.f32.mrf.mxu0
    %v803 = vadd.f32 %v780, %v802
    %804 = vdwg.mxu0
    %s805 = smul.u32 632, 1
    %s806 = sshll.u32 %s805, 4
    %807 = dma.done [#allocation4], %s806
    %s808 = smul.u32 8, 9
    %s809 = smul.u32 %s808, 6
    %s810 = sshll.u32 %s809, 4
    %811 = dma.done %s76, %s810
    %v812 = vld [vmem:[#allocation2] sm:$0xff]
    %v813 = vld [vmem:[#allocation2 + $0x8] sm:$0xff]
    %v814 = vld [vmem:[#allocation2 + $0x10] sm:$0xff]
    %v815 = vld [vmem:[#allocation2 + $0x18] sm:$0xff]
    %v816 = vld [vmem:[#allocation2 + $0x20] sm:$0xff]
    %v817 = vld [vmem:[#allocation2 + $0x28] sm:$0xff]
    %v818 = vld [vmem:[#allocation2 + $0x30] sm:$0xff]
    %v819 = vld [vmem:[#allocation2 + $0x38] sm:$0xff]
    %v820 = vld [vmem:[#allocation2 + $0x40] sm:$0x1]
    %v821 = vld [vmem:[#allocation2 + $0x48] sm:$0x1]
    %vm822 = vcmask 523264
    %v824 = vsel %vm822, %v800, 0
    %v827 = vsel %vm822, %v803, 0
    %829 = vmatpush.msra.mxu0 0.0
    %830 = vmatpush.msra.mxu0 0.0
    %831 = vmatpush.msra.mxu0 0.0
    %832 = vmatpush.msra.mxu0 0.0
    %833 = vmatpush.msra.mxu0 0.0
    %834 = vmatpush.msra.mxu0 0.0
    %835 = vmatpush.msra.mxu0 0.0
    %836 = vmatpush.msra.mxu0 0.0
    %837 = vmatpush.msra.mxu0 %v819
    %838 = vmatpush.msra.mxu0 %v818
    %839 = vmatpush.msra.mxu0 %v817
    %840 = vmatpush.msra.mxu0 %v816
    %841 = vmatpush.msra.mxu0 %v815
    %842 = vmatpush.msra.mxu0 %v814
    %843 = vmatpush.msra.mxu0 %v813
    %844 = vmatpush.msra.mxu0 %v812
    %845 = vmatmul.f32.gmra.mxu0 %v824
    %v846 = vpop.f32.mrf.mxu0
    %v847 = vadd.f32 0.0, %v846
    %848 = vmatmul.f32.gmra.mxu0 %v827
    %v849 = vpop.f32.mrf.mxu0
    %v850 = vadd.f32 0.0, %v849
    %851 = vdwg.mxu0
    %v852 = vsub.f32 %v800, %v847
    %v853 = vsub.f32 %v803, %v850
    %v854 = vmul.f32 %v852, %v852
    %v855 = vmul.f32 %v853, %v853
    %v857 = vsel %vm822, %v854, 0
    %v860 = vsel %vm822, %v855, 0
    %862 = vmatpush.msra.mxu0 0.0
    %863 = vmatpush.msra.mxu0 0.0
    %864 = vmatpush.msra.mxu0 0.0
    %865 = vmatpush.msra.mxu0 0.0
    %866 = vmatpush.msra.mxu0 0.0
    %867 = vmatpush.msra.mxu0 0.0
    %868 = vmatpush.msra.mxu0 0.0
    %869 = vmatpush.msra.mxu0 0.0
    %870 = vmatpush.msra.mxu0 %v819
    %871 = vmatpush.msra.mxu0 %v818
    %872 = vmatpush.msra.mxu0 %v817
    %873 = vmatpush.msra.mxu0 %v816
    %874 = vmatpush.msra.mxu0 %v815
    %875 = vmatpush.msra.mxu0 %v814
    %876 = vmatpush.msra.mxu0 %v813
    %877 = vmatpush.msra.mxu0 %v812
    %878 = vmatmul.f32.gmra.mxu0 %v857
    %v879 = vpop.f32.mrf.mxu0
    %v880 = vadd.f32 1e-06, %v879
    %881 = vmatmul.f32.gmra.mxu0 %v860
    %v882 = vpop.f32.mrf.mxu0
    %v883 = vadd.f32 1e-06, %v882
    %884 = vdwg.mxu0
    %v885 = vrsqrt.pop %v880
    %v886 = vmul.f32 %v885, %v880
    %v887 = vmul.f32 %v886, %v885
    %v888 = vmul.f32 0.5, %v887
    %v889 = vsub.f32 1.5, %v888
    %v890 = vmul.f32 %v885, %v889
    %vm891 = vweird.f32 %v880
    %vm892 = vweird.f32 %v885
    %vm893 = vmor %vm891, %vm892
    %v894 = vsel %vm893, %v885, %v890
    %v895 = vrsqrt.pop %v883
    %v896 = vmul.f32 %v895, %v883
    %v897 = vmul.f32 %v896, %v895
    %v898 = vmul.f32 0.5, %v897
    %v899 = vsub.f32 1.5, %v898
    %v900 = vmul.f32 %v895, %v899
    %vm901 = vweird.f32 %v883
    %vm902 = vweird.f32 %v895
    %vm903 = vmor %vm901, %vm902
    %v904 = vsel %vm903, %v895, %v900
    %v905 = vmul.f32 %v852, %v894
    %v906 = vmul.f32 %v853, %v904
    %v907 = vperm.slane %v820, 0
    %v908 = vmul.f32 %v905, %v907
    %v909 = vmul.f32 %v906, %v907
    %v910 = vperm.slane %v821, 0
    %v911 = vadd.f32 %v908, %v910
    %v912 = vadd.f32 %v909, %v910
    %v913 = vld [vmem:[#allocation3] sm:$0xff]
    %v914 = vld [vmem:[#allocation3 + $0x8] sm:$0xff]
    %v915 = vld [vmem:[#allocation3 + $0x10] sm:$0xff]
    %v916 = vld [vmem:[#allocation3 + $0x18] sm:$0xff]
    %v917 = vld [vmem:[#allocation3 + $0x20] sm:$0xff]
    %v918 = vld [vmem:[#allocation3 + $0x28] sm:$0xff]
    %v919 = vld [vmem:[#allocation3 + $0x30] sm:$0xff]
    %v920 = vld [vmem:[#allocation3 + $0x38] sm:$0xff]
    %v921 = vld [vmem:[#allocation3 + $0x40] sm:$0xff]
    %v922 = vld [vmem:[#allocation3 + $0x48] sm:$0xff]
    %v923 = vld [vmem:[#allocation3 + $0x50] sm:$0xff]
    %v924 = vld [vmem:[#allocation3 + $0x58] sm:$0xff]
    %v925 = vld [vmem:[#allocation3 + $0x60] sm:$0xff]
    %v926 = vld [vmem:[#allocation3 + $0x68] sm:$0xff]
    %v927 = vld [vmem:[#allocation3 + $0x70] sm:$0xff]
    %v928 = vld [vmem:[#allocation3 + $0x78] sm:$0xff]
    %v929 = vld [vmem:[#allocation3 + $0x80] sm:$0xff]
    %v930 = vld [vmem:[#allocation3 + $0x88] sm:$0xff]
    %v931 = vld [vmem:[#allocation3 + $0x90] sm:$0xff]
    %v932 = vld [vmem:[#allocation3 + $0x98] sm:$0xff]
    %v933 = vld [vmem:[#allocation3 + $0xa0] sm:$0xff]
    %v934 = vld [vmem:[#allocation3 + $0xa8] sm:$0xff]
    %v935 = vld [vmem:[#allocation3 + $0xb0] sm:$0xff]
    %v936 = vld [vmem:[#allocation3 + $0xb8] sm:$0xff]
    %v937 = vld [vmem:[#allocation3 + $0xc0] sm:$0xff]
    %v938 = vld [vmem:[#allocation3 + $0xc8] sm:$0xff]
    %v939 = vld [vmem:[#allocation3 + $0xd0] sm:$0xff]
    %v940 = vld [vmem:[#allocation3 + $0xd8] sm:$0xff]
    %v941 = vld [vmem:[#allocation3 + $0xe0] sm:$0xff]
    %v942 = vld [vmem:[#allocation3 + $0xe8] sm:$0xff]
    %v943 = vld [vmem:[#allocation3 + $0xf0] sm:$0xff]
    %v944 = vld [vmem:[#allocation3 + $0xf8] sm:$0xff]
    %v945 = vld [vmem:[#allocation3 + $0x100] sm:$0xff]
    %v946 = vld [vmem:[#allocation3 + $0x108] sm:$0xff]
    %v947 = vld [vmem:[#allocation3 + $0x110] sm:$0xff]
    %v948 = vld [vmem:[#allocation3 + $0x118] sm:$0xff]
    %v949 = vld [vmem:[#allocation3 + $0x120] sm:$0xff]
    %v950 = vld [vmem:[#allocation3 + $0x128] sm:$0xff]
    %v951 = vld [vmem:[#allocation3 + $0x130] sm:$0xff]
    %v952 = vld [vmem:[#allocation3 + $0x138] sm:$0xff]
    %v953 = vld [vmem:[#allocation3 + $0x140] sm:$0xff]
    %v954 = vld [vmem:[#allocation3 + $0x148] sm:$0xff]
    %v955 = vld [vmem:[#allocation3 + $0x150] sm:$0xff]
    %v956 = vld [vmem:[#allocation3 + $0x158] sm:$0xff]
    %v957 = vld [vmem:[#allocation3 + $0x160] sm:$0xff]
    %v958 = vld [vmem:[#allocation3 + $0x168] sm:$0xff]
    %v959 = vld [vmem:[#allocation3 + $0x170] sm:$0xff]
    %v960 = vld [vmem:[#allocation3 + $0x178] sm:$0xff]
    %s961 = scalar_lea.vmem [#allocation3], 384
    %v962 = vld [vmem:[%s961] ss:$8 sm:$0x3]
    %v964 = vsel %vm822, %v911, 0
    %v967 = vsel %vm822, %v912, 0
    %969 = vmatpush.msra.mxu0 0.0
    %970 = vmatpush.msra.mxu0 0.0
    %971 = vmatpush.msra.mxu0 0.0
    %972 = vmatpush.msra.mxu0 0.0
    %973 = vmatpush.msra.mxu0 0.0
    %974 = vmatpush.msra.mxu0 0.0
    %975 = vmatpush.msra.mxu0 0.0
    %976 = vmatpush.msra.mxu0 0.0
    %977 = vmatpush.msra.mxu0 %v955
    %978 = vmatpush.msra.mxu0 %v949
    %979 = vmatpush.msra.mxu0 %v943
    %980 = vmatpush.msra.mxu0 %v937
    %981 = vmatpush.msra.mxu0 %v931
    %982 = vmatpush.msra.mxu0 %v925
    %983 = vmatpush.msra.mxu0 %v919
    %984 = vmatpush.msra.mxu0 %v913
    %985 = vmatmul.f32.gmra.mxu0 %v964
    %v986 = vpop.f32.mrf.mxu0
    %v987 = vadd.f32 0.0, %v986
    %988 = vmatmul.f32.gmra.mxu0 %v967
    %v989 = vpop.f32.mrf.mxu0
    %v990 = vadd.f32 0.0, %v989
    %991 = vdwg.mxu0
    %992 = vmatpush.msra.mxu0 0.0
    %993 = vmatpush.msra.mxu0 0.0
    %994 = vmatpush.msra.mxu0 0.0
    %995 = vmatpush.msra.mxu0 0.0
    %996 = vmatpush.msra.mxu0 0.0
    %997 = vmatpush.msra.mxu0 0.0
    %998 = vmatpush.msra.mxu0 0.0
    %999 = vmatpush.msra.mxu0 0.0
    %1000 = vmatpush.msra.mxu0 %v956
    %1001 = vmatpush.msra.mxu0 %v950
    %1002 = vmatpush.msra.mxu0 %v944
    %1003 = vmatpush.msra.mxu0 %v938
    %1004 = vmatpush.msra.mxu0 %v932
    %1005 = vmatpush.msra.mxu0 %v926
    %1006 = vmatpush.msra.mxu0 %v920
    %1007 = vmatpush.msra.mxu0 %v914
    %1008 = vmatmul.f32.gmra.mxu0 %v964
    %v1009 = vpop.f32.mrf.mxu0
    %v1010 = vadd.f32 0.0, %v1009
    %1011 = vmatmul.f32.gmra.mxu0 %v967
    %v1012 = vpop.f32.mrf.mxu0
    %v1013 = vadd.f32 0.0, %v1012
    %1014 = vdwg.mxu0
    %1015 = vmatpush.msra.mxu0 0.0
    %1016 = vmatpush.msra.mxu0 0.0
    %1017 = vmatpush.msra.mxu0 0.0
    %1018 = vmatpush.msra.mxu0 0.0
    %1019 = vmatpush.msra.mxu0 0.0
    %1020 = vmatpush.msra.mxu0 0.0
    %1021 = vmatpush.msra.mxu0 0.0
    %1022 = vmatpush.msra.mxu0 0.0
    %1023 = vmatpush.msra.mxu0 %v957
    %1024 = vmatpush.msra.mxu0 %v951
    %1025 = vmatpush.msra.mxu0 %v945
    %1026 = vmatpush.msra.mxu0 %v939
    %1027 = vmatpush.msra.mxu0 %v933
    %1028 = vmatpush.msra.mxu0 %v927
    %1029 = vmatpush.msra.mxu0 %v921
    %1030 = vmatpush.msra.mxu0 %v915
    %1031 = vmatmul.f32.gmra.mxu0 %v964
    %v1032 = vpop.f32.mrf.mxu0
    %v1033 = vadd.f32 0.0, %v1032
    %1034 = vmatmul.f32.gmra.mxu0 %v967
    %v1035 = vpop.f32.mrf.mxu0
    %v1036 = vadd.f32 0.0, %v1035
    %1037 = vdwg.mxu0
    %1038 = vmatpush.msra.mxu0 0.0
    %1039 = vmatpush.msra.mxu0 0.0
    %1040 = vmatpush.msra.mxu0 0.0
    %1041 = vmatpush.msra.mxu0 0.0
    %1042 = vmatpush.msra.mxu0 0.0
    %1043 = vmatpush.msra.mxu0 0.0
    %1044 = vmatpush.msra.mxu0 0.0
    %1045 = vmatpush.msra.mxu0 0.0
    %1046 = vmatpush.msra.mxu0 %v958
    %1047 = vmatpush.msra.mxu0 %v952
    %1048 = vmatpush.msra.mxu0 %v946
    %1049 = vmatpush.msra.mxu0 %v940
    %1050 = vmatpush.msra.mxu0 %v934
    %1051 = vmatpush.msra.mxu0 %v928
    %1052 = vmatpush.msra.mxu0 %v922
    %1053 = vmatpush.msra.mxu0 %v916
    %1054 = vmatmul.f32.gmra.mxu0 %v964
    %v1055 = vpop.f32.mrf.mxu0
    %v1056 = vadd.f32 0.0, %v1055
    %1057 = vmatmul.f32.gmra.mxu0 %v967
    %v1058 = vpop.f32.mrf.mxu0
    %v1059 = vadd.f32 0.0, %v1058
    %1060 = vdwg.mxu0
    %1061 = vmatpush.msra.mxu0 0.0
    %1062 = vmatpush.msra.mxu0 0.0
    %1063 = vmatpush.msra.mxu0 0.0
    %1064 = vmatpush.msra.mxu0 0.0
    %1065 = vmatpush.msra.mxu0 0.0
    %1066 = vmatpush.msra.mxu0 0.0
    %1067 = vmatpush.msra.mxu0 0.0
    %1068 = vmatpush.msra.mxu0 0.0
    %1069 = vmatpush.msra.mxu0 %v959
    %1070 = vmatpush.msra.mxu0 %v953
    %1071 = vmatpush.msra.mxu0 %v947
    %1072 = vmatpush.msra.mxu0 %v941
    %1073 = vmatpush.msra.mxu0 %v935
    %1074 = vmatpush.msra.mxu0 %v929
    %1075 = vmatpush.msra.mxu0 %v923
    %1076 = vmatpush.msra.mxu0 %v917
    %1077 = vmatmul.f32.gmra.mxu0 %v964
    %v1078 = vpop.f32.mrf.mxu0
    %v1079 = vadd.f32 0.0, %v1078
    %1080 = vmatmul.f32.gmra.mxu0 %v967
    %v1081 = vpop.f32.mrf.mxu0
    %v1082 = vadd.f32 0.0, %v1081
    %1083 = vdwg.mxu0
    %1084 = vmatpush.msra.mxu0 0.0
    %1085 = vmatpush.msra.mxu0 0.0
    %1086 = vmatpush.msra.mxu0 0.0
    %1087 = vmatpush.msra.mxu0 0.0
    %1088 = vmatpush.msra.mxu0 0.0
    %1089 = vmatpush.msra.mxu0 0.0
    %1090 = vmatpush.msra.mxu0 0.0
    %1091 = vmatpush.msra.mxu0 0.0
    %1092 = vmatpush.msra.mxu0 %v960
    %1093 = vmatpush.msra.mxu0 %v954
    %1094 = vmatpush.msra.mxu0 %v948
    %1095 = vmatpush.msra.mxu0 %v942
    %1096 = vmatpush.msra.mxu0 %v936
    %1097 = vmatpush.msra.mxu0 %v930
    %1098 = vmatpush.msra.mxu0 %v924
    %1099 = vmatpush.msra.mxu0 %v918
    %1100 = vmatmul.f32.gmra.mxu0 %v964
    %v1101 = vpop.f32.mrf.mxu0
    %v1102 = vadd.f32 0.0, %v1101
    %1103 = vmatmul.f32.gmra.mxu0 %v967
    %v1104 = vpop.f32.mrf.mxu0
    %v1105 = vadd.f32 0.0, %v1104
    %1106 = vdwg.mxu0
    %v1107 = vand.u32 %v433, 7
    %v1108 = vand.u32 %v434, 7
    %v1109 = vrot.slane %v987, 7
    %v1110 = vrot.slane %v1010, 7
    %v1111 = vrot.slane %v990, 7
    %v1112 = vrot.slane %v1013, 7
    %v1113 = vsel %vm511, %v1109, %v1111
    %v1114 = vsel %vm511, %v1110, %v1112
    %v1115 = vsel %vm511, %v1111, %v1109
    %v1116 = vsel %vm511, %v1112, %v1110
    %vm1117 = vcmp.ge.s32.totalorder %v1107, 1
    %vm1118 = vcmp.ge.s32.totalorder %v1108, 1
    %vm1119 = vcmp.lt.s32.totalorder %v1107, 9
    %vm1120 = vcmp.lt.s32.totalorder %v1108, 9
    %vm1121 = vmand %vm1117, %vm1119
    %vm1122 = vmand %vm1118, %vm1120
    %v1123 = vsel %vm1121, 1, 0
    %v1124 = vsel %vm1122, 1, 0
    %vm1125 = vcmp.eq.s32.totalorder %v1123, 1
    %vm1126 = vcmp.eq.s32.totalorder %v1124, 1
    %v1127 = vsel %vm1125, %v1115, 0.0
    %v1128 = vsel %vm1125, %v1116, 0.0
    %v1129 = vsel %vm1126, %v1113, 0.0
    %v1130 = vsel %vm1126, %v1114, 0.0
    %v1131 = vrot.slane %v1079, 1
    %v1132 = vrot.slane %v1102, 1
    %v1133 = vrot.slane %v1082, 1
    %v1134 = vrot.slane %v1105, 1
    %v1135 = vsel %vm544, %v1131, %v1133
    %v1136 = vsel %vm544, %v1132, %v1134
    %v1137 = vsel %vm544, %v1133, %v1131
    %v1138 = vsel %vm544, %v1134, %v1132
    %vm1139 = vcmp.ge.s32.totalorder %v1107, 4294967295
    %vm1140 = vcmp.ge.s32.totalorder %v1108, 4294967295
    %vm1141 = vcmp.lt.s32.totalorder %v1107, 7
    %vm1142 = vcmp.lt.s32.totalorder %v1108, 7
    %vm1143 = vmand %vm1139, %vm1141
    %vm1144 = vmand %vm1140, %vm1142
    %v1145 = vsel %vm1143, 1, 0
    %v1146 = vsel %vm1144, 1, 0
    %vm1147 = vcmp.eq.s32.totalorder %v1145, 1
    %vm1148 = vcmp.eq.s32.totalorder %v1146, 1
    %v1149 = vsel %vm1147, %v1135, 0.0
    %v1150 = vsel %vm1147, %v1136, 0.0
    %v1151 = vsel %vm1148, %v1137, 0.0
    %v1152 = vsel %vm1148, %v1138, 0.0
    %v1153 = vadd.f32 %v1127, %v1033
    %v1154 = vadd.f32 %v1128, %v1056
    %v1155 = vadd.f32 %v1129, %v1036
    %v1156 = vadd.f32 %v1130, %v1059
    %v1157 = vadd.f32 %v1153, %v1149
    %v1158 = vadd.f32 %v1154, %v1150
    %v1159 = vadd.f32 %v1155, %v1151
    %v1160 = vadd.f32 %v1156, %v1152
    %v1162 = vperm.slane %v962, 0
    %v1163 = vperm.slane %v962, 1
    %v1166 = vadd.f32 %v1157, %v1162
    %v1167 = vadd.f32 %v1158, %v1163
    %v1168 = vadd.f32 %v1159, %v1162
    %v1169 = vadd.f32 %v1160, %v1163
    %vm1170 = vcmp.gt.f32.partialorder %v1166, 0.0
    %vm1171 = vcmp.gt.f32.partialorder %v1167, 0.0
    %vm1172 = vcmp.gt.f32.partialorder %v1168, 0.0
    %vm1173 = vcmp.gt.f32.partialorder %v1169, 0.0
    %v1174 = vmul.f32 %v1166, 0.2
    %v1175 = vmul.f32 %v1167, 0.2
    %v1176 = vmul.f32 %v1168, 0.2
    %v1177 = vmul.f32 %v1169, 0.2
    %v1178 = vsel %vm1170, %v1166, %v1174
    %v1179 = vsel %vm1171, %v1167, %v1175
    %v1180 = vsel %vm1172, %v1168, %v1176
    %v1181 = vsel %vm1173, %v1169, %v1177
    %v1182 = vld [vmem:[#allocation2 + $0x50] sm:$0xff]
    %v1184 = vsel %vm96, %v1182, 0
    %1186 = vmatpush.msra.mxu0 0.0
    %1187 = vmatpush.msra.mxu0 0.0
    %1188 = vmatpush.msra.mxu0 0.0
    %1189 = vmatpush.msra.mxu0 0.0
    %1190 = vmatpush.msra.mxu0 0.0
    %1191 = vmatpush.msra.mxu0 0.0
    %1192 = vmatpush.msra.mxu0 0.0
    %1193 = vmatpush.msra.mxu0 0.0
    %1194 = vmatpush.msra.mxu0 0.0
    %1195 = vmatpush.msra.mxu0 0.0
    %1196 = vmatpush.msra.mxu0 0.0
    %1197 = vmatpush.msra.mxu0 0.0
    %1198 = vmatpush.msra.mxu0 0.0
    %1199 = vmatpush.msra.mxu0 0.0
    %1200 = vmatpush.msra.mxu0 %v1180
    %1201 = vmatpush.msra.mxu0 %v1178
    %1202 = vmatmul.f32.gmra.mxu0 %v1184
    %v1203 = vpop.f32.mrf.mxu0
    %v1204 = vadd.f32 0.0, %v1203
    %1205 = vdwg.mxu0
    %1206 = vmatpush.msra.mxu0 0.0
    %1207 = vmatpush.msra.mxu0 0.0
    %1208 = vmatpush.msra.mxu0 0.0
    %1209 = vmatpush.msra.mxu0 0.0
    %1210 = vmatpush.msra.mxu0 0.0
    %1211 = vmatpush.msra.mxu0 0.0
    %1212 = vmatpush.msra.mxu0 0.0
    %1213 = vmatpush.msra.mxu0 0.0
    %1214 = vmatpush.msra.mxu0 0.0
    %1215 = vmatpush.msra.mxu0 0.0
    %1216 = vmatpush.msra.mxu0 0.0
    %1217 = vmatpush.msra.mxu0 0.0
    %1218 = vmatpush.msra.mxu0 0.0
    %1219 = vmatpush.msra.mxu0 0.0
    %1220 = vmatpush.msra.mxu0 %v1181
    %1221 = vmatpush.msra.mxu0 %v1179
    %1222 = vmatmul.f32.gmra.mxu0 %v1184
    %v1223 = vpop.f32.mrf.mxu0
    %v1224 = vadd.f32 0.0, %v1223
    %1225 = vdwg.mxu0
    %v1226 = vld [vmem:[#allocation2 + $0x58] sm:$0xff]
    %v1227 = vld [vmem:[#allocation2 + $0x60] sm:$0xff]
    %v1228 = vld [vmem:[#allocation2 + $0x68] sm:$0xff]
    %v1229 = vld [vmem:[#allocation2 + $0x70] sm:$0xff]
    %v1230 = vld [vmem:[#allocation2 + $0x78] sm:$0xff]
    %v1231 = vld [vmem:[#allocation2 + $0x80] sm:$0xff]
    %v1232 = vld [vmem:[#allocation2 + $0x88] sm:$0xff]
    %v1233 = vld [vmem:[#allocation2 + $0x90] sm:$0xff]
    %v1234 = vld [vmem:[#allocation2 + $0x98] sm:$0xff]
    %v1235 = vld [vmem:[#allocation2 + $0xa0] sm:$0xff]
    %v1236 = vld [vmem:[#allocation2 + $0xa8] sm:$0xff]
    %v1237 = vld [vmem:[#allocation2 + $0xb0] sm:$0xff]
    %v1238 = vld [vmem:[#allocation2 + $0xb8] sm:$0xff]
    %v1239 = vld [vmem:[#allocation2 + $0xc0] sm:$0xff]
    %v1240 = vld [vmem:[#allocation2 + $0xc8] sm:$0xff]
    %v1241 = vld [vmem:[#allocation2 + $0xd0] sm:$0xff]
    %v1242 = vld [vmem:[#allocation2 + $0xd8] sm:$0xff]
    %v1243 = vld [vmem:[#allocation2 + $0xe0] sm:$0xff]
    %v1244 = vld [vmem:[#allocation2 + $0xe8] sm:$0xff]
    %v1245 = vld [vmem:[#allocation2 + $0xf0] sm:$0xff]
    %v1246 = vld [vmem:[#allocation2 + $0xf8] sm:$0xff]
    %v1247 = vld [vmem:[#allocation2 + $0x100] sm:$0xff]
    %v1248 = vld [vmem:[#allocation2 + $0x108] sm:$0xff]
    %v1249 = vld [vmem:[#allocation2 + $0x110] sm:$0xff]
    %v1250 = vld [vmem:[#allocation2 + $0x118] sm:$0xff]
    %v1251 = vld [vmem:[#allocation2 + $0x120] sm:$0xff]
    %v1252 = vld [vmem:[#allocation2 + $0x128] sm:$0xff]
    %v1253 = vld [vmem:[#allocation2 + $0x130] sm:$0xff]
    %v1254 = vld [vmem:[#allocation2 + $0x138] sm:$0xff]
    %v1255 = vld [vmem:[#allocation2 + $0x140] sm:$0xff]
    %v1256 = vld [vmem:[#allocation2 + $0x148] sm:$0xff]
    %v1257 = vld [vmem:[#allocation2 + $0x150] sm:$0xff]
    %1258 = vmatpush.msra.mxu0 %v1241
    %1259 = vmatpush.msra.mxu0 %v1240
    %1260 = vmatpush.msra.mxu0 %v1239
    %1261 = vmatpush.msra.mxu0 %v1238
    %1262 = vmatpush.msra.mxu0 %v1237
    %1263 = vmatpush.msra.mxu0 %v1236
    %1264 = vmatpush.msra.mxu0 %v1235
    %1265 = vmatpush.msra.mxu0 %v1234
    %1266 = vmatpush.msra.mxu0 %v1233
    %1267 = vmatpush.msra.mxu0 %v1232
    %1268 = vmatpush.msra.mxu0 %v1231
    %1269 = vmatpush.msra.mxu0 %v1230
    %1270 = vmatpush.msra.mxu0 %v1229
    %1271 = vmatpush.msra.mxu0 %v1228
    %1272 = vmatpush.msra.mxu0 %v1227
    %1273 = vmatpush.msra.mxu0 %v1226
    %1274 = vmatmul.f32.gmra.mxu0 %v1204
    %v1275 = vpop.f32.mrf.mxu0
    %v1276 = vadd.f32 0.0, %v1275
    %1277 = vdwg.mxu0
    %1278 = vmatpush.msra.mxu0 %v1257
    %1279 = vmatpush.msra.mxu0 %v1256
    %1280 = vmatpush.msra.mxu0 %v1255
    %1281 = vmatpush.msra.mxu0 %v1254
    %1282 = vmatpush.msra.mxu0 %v1253
    %1283 = vmatpush.msra.mxu0 %v1252
    %1284 = vmatpush.msra.mxu0 %v1251
    %1285 = vmatpush.msra.mxu0 %v1250
    %1286 = vmatpush.msra.mxu0 %v1249
    %1287 = vmatpush.msra.mxu0 %v1248
    %1288 = vmatpush.msra.mxu0 %v1247
    %1289 = vmatpush.msra.mxu0 %v1246
    %1290 = vmatpush.msra.mxu0 %v1245
    %1291 = vmatpush.msra.mxu0 %v1244
    %1292 = vmatpush.msra.mxu0 %v1243
    %1293 = vmatpush.msra.mxu0 %v1242
    %1294 = vmatmul.f32.gmra.mxu0 %v1224
    %v1295 = vpop.f32.mrf.mxu0
    %v1296 = vadd.f32 %v1276, %v1295
    %1297 = vdwg.mxu0
    %v1298 = vld [vmem:[#allocation2 + $0x158] sm:$0xff]
    %v1299 = vld [vmem:[#allocation2 + $0x160] sm:$0xff]
    %v1300 = vld [vmem:[#allocation2 + $0x168] sm:$0xff]
    %v1301 = vld [vmem:[#allocation2 + $0x170] sm:$0xff]
    %v1302 = vld [vmem:[#allocation2 + $0x178] sm:$0xff]
    %v1303 = vld [vmem:[#allocation2 + $0x180] sm:$0xff]
    %v1304 = vld [vmem:[#allocation2 + $0x188] sm:$0xff]
    %v1305 = vld [vmem:[#allocation2 + $0x190] sm:$0xff]
    %v1306 = vld [vmem:[#allocation2 + $0x198] sm:$0xff]
    %v1307 = vld [vmem:[#allocation2 + $0x1a0] sm:$0xff]
    %v1308 = vld [vmem:[#allocation2 + $0x1a8] sm:$0xff]
    %v1309 = vld [vmem:[#allocation2 + $0x1b0] sm:$0xff]
    %v1310 = vld [vmem:[#allocation2 + $0x1b8] sm:$0xff]
    %v1311 = vld [vmem:[#allocation2 + $0x1c0] sm:$0xff]
    %v1312 = vld [vmem:[#allocation2 + $0x1c8] sm:$0xff]
    %v1313 = vld [vmem:[#allocation2 + $0x1d0] sm:$0xff]
    %v1314 = vld [vmem:[#allocation2 + $0x1d8] sm:$0x1]
    %v1315 = vld [vmem:[#allocation2 + $0x1e0] sm:$0x1]
    %1316 = vmatpush.msra.mxu0 %v1313
    %1317 = vmatpush.msra.mxu0 %v1312
    %1318 = vmatpush.msra.mxu0 %v1311
    %1319 = vmatpush.msra.mxu0 %v1310
    %1320 = vmatpush.msra.mxu0 %v1309
    %1321 = vmatpush.msra.mxu0 %v1308
    %1322 = vmatpush.msra.mxu0 %v1307
    %1323 = vmatpush.msra.mxu0 %v1306
    %1324 = vmatpush.msra.mxu0 %v1305
    %1325 = vmatpush.msra.mxu0 %v1304
    %1326 = vmatpush.msra.mxu0 %v1303
    %1327 = vmatpush.msra.mxu0 %v1302
    %1328 = vmatpush.msra.mxu0 %v1301
    %1329 = vmatpush.msra.mxu0 %v1300
    %1330 = vmatpush.msra.mxu0 %v1299
    %1331 = vmatpush.msra.mxu0 %v1298
    %1332 = vmatmul.f32.gmra.mxu0 %v1296
    %v1333 = vpop.f32.mrf.mxu0
    %v1334 = vadd.f32 0.0, %v1333
    %1335 = vdwg.mxu0
    %v1336 = vsub.f32 %v1296, %v1334
    %v1337 = vmul.f32 %v1336, %v1336
    %1338 = vmatpush.msra.mxu0 %v1313
    %1339 = vmatpush.msra.mxu0 %v1312
    %1340 = vmatpush.msra.mxu0 %v1311
    %1341 = vmatpush.msra.mxu0 %v1310
    %1342 = vmatpush.msra.mxu0 %v1309
    %1343 = vmatpush.msra.mxu0 %v1308
    %1344 = vmatpush.msra.mxu0 %v1307
    %1345 = vmatpush.msra.mxu0 %v1306
    %1346 = vmatpush.msra.mxu0 %v1305
    %1347 = vmatpush.msra.mxu0 %v1304
    %1348 = vmatpush.msra.mxu0 %v1303
    %1349 = vmatpush.msra.mxu0 %v1302
    %1350 = vmatpush.msra.mxu0 %v1301
    %1351 = vmatpush.msra.mxu0 %v1300
    %1352 = vmatpush.msra.mxu0 %v1299
    %1353 = vmatpush.msra.mxu0 %v1298
    %1354 = vmatmul.f32.gmra.mxu0 %v1337
    %v1355 = vpop.f32.mrf.mxu0
    %v1356 = vadd.f32 1e-06, %v1355
    %1357 = vdwg.mxu0
    %v1358 = vrsqrt.pop %v1356
    %v1359 = vmul.f32 %v1358, %v1356
    %v1360 = vmul.f32 %v1359, %v1358
    %v1361 = vmul.f32 0.5, %v1360
    %v1362 = vsub.f32 1.5, %v1361
    %v1363 = vmul.f32 %v1358, %v1362
    %vm1364 = vweird.f32 %v1356
    %vm1365 = vweird.f32 %v1358
    %vm1366 = vmor %vm1364, %vm1365
    %v1367 = vsel %vm1366, %v1358, %v1363
    %v1368 = vmul.f32 %v1336, %v1367
    %v1369 = vperm.slane %v1314, 0
    %v1370 = vmul.f32 %v1368, %v1369
    %v1371 = vperm.slane %v1315, 0
    %v1372 = vadd.f32 %v1370, %v1371
    %v1373 = vld [vmem:[#allocation2 + $0x1e8] sm:$0xff]
    %v1374 = vld [vmem:[#allocation2 + $0x1f0] sm:$0xff]
    %v1375 = vld [vmem:[#allocation2 + $0x1f8] sm:$0xff]
    %v1376 = vld [vmem:[#allocation2 + $0x200] sm:$0xff]
    %v1377 = vld [vmem:[#allocation2 + $0x208] sm:$0xff]
    %v1378 = vld [vmem:[#allocation2 + $0x210] sm:$0xff]
    %v1379 = vld [vmem:[#allocation2 + $0x218] sm:$0xff]
    %v1380 = vld [vmem:[#allocation2 + $0x220] sm:$0xff]
    %v1381 = vld [vmem:[#allocation2 + $0x228] sm:$0xff]
    %v1382 = vld [vmem:[#allocation2 + $0x230] sm:$0xff]
    %v1383 = vld [vmem:[#allocation2 + $0x238] sm:$0xff]
    %v1384 = vld [vmem:[#allocation2 + $0x240] sm:$0xff]
    %v1385 = vld [vmem:[#allocation2 + $0x248] sm:$0xff]
    %v1386 = vld [vmem:[#allocation2 + $0x250] sm:$0xff]
    %v1387 = vld [vmem:[#allocation2 + $0x258] sm:$0xff]
    %v1388 = vld [vmem:[#allocation2 + $0x260] sm:$0xff]
    %v1389 = vld [vmem:[#allocation2 + $0x268] sm:$0x1]
    %1390 = vmatpush.msra.mxu0 %v1388
    %1391 = vmatpush.msra.mxu0 %v1387
    %1392 = vmatpush.msra.mxu0 %v1386
    %1393 = vmatpush.msra.mxu0 %v1385
    %1394 = vmatpush.msra.mxu0 %v1384
    %1395 = vmatpush.msra.mxu0 %v1383
    %1396 = vmatpush.msra.mxu0 %v1382
    %1397 = vmatpush.msra.mxu0 %v1381
    %1398 = vmatpush.msra.mxu0 %v1380
    %1399 = vmatpush.msra.mxu0 %v1379
    %1400 = vmatpush.msra.mxu0 %v1378
    %1401 = vmatpush.msra.mxu0 %v1377
    %1402 = vmatpush.msra.mxu0 %v1376
    %1403 = vmatpush.msra.mxu0 %v1375
    %1404 = vmatpush.msra.mxu0 %v1374
    %1405 = vmatpush.msra.mxu0 %v1373
    %1406 = vmatmul.f32.gmra.mxu0 %v1372
    %v1407 = vpop.f32.mrf.mxu0
    %v1408 = vadd.f32 0.0, %v1407
    %1409 = vdwg.mxu0
    %v1410 = vand.u32 %v433, 3
    %v1411 = vrot.slane %v1408, 7
    %vm1412 = vcmp.ge.s32.totalorder %v1410, 1
    %vm1413 = vcmp.lt.s32.totalorder %v1410, 5
    %vm1414 = vmand %vm1412, %vm1413
    %v1415 = vsel %vm1414, 1, 0
    %vm1416 = vcmp.eq.s32.totalorder %v1415, 1
    %v1417 = vsel %vm1416, %v1411, 0.0
    %1419 = vrot.lane.b32.xlu0 %v1408, 120
    %v1420 = vpop.permute.xlu0 %1419
    %v1422 = vrot.slane %v1420, 1
    %vm1423 = vcmp.ge.s32.totalorder %v1410, 4294967295
    %vm1424 = vcmp.lt.s32.totalorder %v1410, 3
    %vm1425 = vmand %vm1423, %vm1424
    %v1426 = vsel %vm1425, 1, 0
    %vm1427 = vcmp.eq.s32.totalorder %v1426, 1
    %v1428 = vsel %vm1427, %v1422, 0.0
    %1429 = vrot.lane.b32.xlu0 %v1408, 124
    %v1430 = vpop.permute.xlu0 %1429
    %v1432 = vadd.f32 %v1417, %v1430
    %v1433 = vadd.f32 %v1432, %v1428
    %s1435 = vtos %v1389
    %v1436 = vstv %s1435
    %v1438 = vadd.f32 %v1433, %v1436
    %vm1439 = vcmp.gt.f32.partialorder %v1438, 0.0
    %v1440 = vmul.f32 %v1438, 0.2
    %v1441 = vsel %vm1439, %v1438, %v1440
    %v1442 = vld [vmem:[#allocation2 + $0x270] sm:$0x3]
    %vm1443 = vcmask 64512
    %v1445 = vsel %vm1443, %v1442, 0
    %1447 = vmatpush.msra.mxu0 0.0
    %1448 = vmatpush.msra.mxu0 0.0
    %1449 = vmatpush.msra.mxu0 0.0
    %1450 = vmatpush.msra.mxu0 0.0
    %1451 = vmatpush.msra.mxu0 0.0
    %1452 = vmatpush.msra.mxu0 0.0
    %1453 = vmatpush.msra.mxu0 0.0
    %1454 = vmatpush.msra.mxu0 0.0
    %1455 = vmatpush.msra.mxu0 0.0
    %1456 = vmatpush.msra.mxu0 0.0
    %1457 = vmatpush.msra.mxu0 0.0
    %1458 = vmatpush.msra.mxu0 0.0
    %1459 = vmatpush.msra.mxu0 0.0
    %1460 = vmatpush.msra.mxu0 0.0
    %1461 = vmatpush.msra.mxu0 0.0
    %1462 = vmatpush.msra.mxu0 %v1441
    %1463 = vmatmul.f32.gmra.mxu0 %v1445
    %v1464 = vpop.f32.mrf.mxu0
    %v1465 = vadd.f32 0.0, %v1464
    %1466 = vdwg.mxu0
    %vm1467 = vcmask 25600
    %v1468 = vsel %vm1467, %v1465, 0.0
    %1469 = vadd.xlane.f32.xlu0 %v1468
    %v1470 = vpop.xlane.xlu0 %1469
    %v1471 = vsub.f32 0.0, %v1470
    %v1472 = vmul.f32 %v1471, 1.442695
    %v1473 = vpow.pop %v1472
    %v1474 = vadd.f32 %v1473, 1.0
    %v1475 = vrcp.pop %v1474
    %v1476 = vmul.f32 %v1474, %v1475
    %v1477 = vsub.f32 1.0, %v1476
    %v1478 = vmul.f32 %v1475, %v1477
    %v1479 = vadd.f32 %v1475, %v1478
    %vm1480 = vweird.f32 %v1474
    %vm1481 = vweird.f32 %v1475
    %vm1482 = vmor %vm1480, %vm1481
    %v1483 = vsel %vm1482, %v1475, %v1479
    %v1484 = vand.u32 2147483647, %v1474
    %vm1485 = vcmp.eq.f32.partialorder %v1484, 8.507059e+37
    %v1486 = vand.u32 %v1474, 2147483648
    %v1487 = vor.u32 1.1754944e-38, %v1486
    %v1488 = vsel %vm1485, %v1487, %v1483
    %v1489 = vmul.f32 1.0, %v1488
    %vm1490 = vcmask 1024
    %1491 = vst.msk [vmem:[%s5] sm:$0x3] %vm1490, %v1489
    // Predicated region
    $region34: #{discriminator_conv_forward.1} parent=1 // pred_check
      _
    $region35: #{discriminator_conv_forward.1} parent=1 // pred_check_branch
      %1493 = sbr.rel (0) target = $region37
    $region36: #{discriminator_conv_forward.1} parent=1 // pred_region
      _
    $region37: #{discriminator_conv_forward.1} parent=1 // pred_fallthru
      _
    // Predicated region
    $region38: #{discriminator_conv_forward.1} parent=1 // pred_check
      _
    $region39: #{discriminator_conv_forward.1} parent=1 // pred_check_branch
      %1495 = sbr.rel (0) target = $region41
    $region40: #{discriminator_conv_forward.1} parent=1 // pred_region
      _
    $region41: #{discriminator_conv_forward.1} parent=1 // pred_fallthru
      _
    %1496 = vsyncpa [#allocation6], 1
    %1497 = vsyncpa [#allocation8], 1
  %1498 = vsyncmov [#allocation4]
  %s1499 = vpop.sfrf %1498
  %p1500 = scmp.eq.s32.totalorder %s1499, 0
  %p1501 = pneg %p1500
  %1503 = shalt.err (%p1501)
  %s1504 = scalar_lea.sflag [#allocation4], 1
  %1505 = vsyncmov %s1504
  %s1506 = vpop.sfrf %1505
  %p1507 = scmp.eq.s32.totalorder %s1506, 0
  %p1508 = pneg %p1507
  %1510 = shalt.err (%p1508)

</llo_original>
